<compile_context>
chip_gen: v7x
topology: tpu7x:2x2x1
jax: 0.10.0
libtpu: 0.0.40
codegen_flags: <defaults>
</compile_context>

<pallas_src>
import math
import functools

import jax
import jax.numpy as jnp
from jax.experimental import pallas as pl
from jax.experimental.pallas import tpu as pltpu


def _layer_norm(x, gamma, beta, eps=1e-5):
    # PyTorch LayerNorm: biased variance over last dim.
    mean = jnp.mean(x, axis=-1, keepdims=True)
    var = jnp.mean((x - mean) ** 2, axis=-1, keepdims=True)
    return (x - mean) * jax.lax.rsqrt(var + eps) * gamma + beta


def _gelu_exact(x):
    # nn.GELU() default = exact erf formulation.
    return 0.5 * x * (1.0 + jax.lax.erf(x / jnp.sqrt(2.0).astype(x.dtype)))


def block_kernel(x_ref,
                 ln1_g_ref, ln1_b_ref,
                 wq_ref, bq_ref, wk_ref, bk_ref, wv_ref, bv_ref,
                 wp_ref, bp_ref,
                 ln2_g_ref, ln2_b_ref,
                 w1_ref, b1_ref, w2_ref, b2_ref,
                 out_ref,
                 *, n_head, compute_dtype):
    x = x_ref[0]                       # (T, C)
    T, C = x.shape

    # Cast matmul inputs only (accumulation stays f32 via preferred_element_type).
    cast = (lambda a: a) if compute_dtype is None else (lambda a: a.astype(compute_dtype))

    # ---- LN1 ----
    h = _layer_norm(x, ln1_g_ref[...], ln1_b_ref[...])            # (T, C) f32

    # ---- QKV projections, per-head batched on the leading dim (MXU) ----
    # Weights arrive pre-split: (n_head, C, hd); 1/sqrt(hd) already folded into Q.
    hb = jnp.broadcast_to(cast(h)[None], (n_head, T, C))          # (H, T, C)
    q = jnp.einsum('htc,hcd->htd', hb, cast(wq_ref[...]),
                   preferred_element_type=jnp.float32) + bq_ref[...]   # (H, T, hd)
    k = jnp.einsum('htc,hcd->htd', hb, cast(wk_ref[...]),
                   preferred_element_type=jnp.float32) + bk_ref[...]
    v = jnp.einsum('htc,hcd->htd', hb, cast(wv_ref[...]),
                   preferred_element_type=jnp.float32) + bv_ref[...]

    # ---- attention scores + softmax (scale already folded into q) ----
    s = jnp.einsum('hqd,hkd->hqk', cast(q), cast(k),
                   preferred_element_type=jnp.float32)            # (H, T, T)
    s = s - jnp.max(s, axis=-1, keepdims=True)
    p = jnp.exp(s)
    p = p * pl.reciprocal(jnp.sum(p, axis=-1, keepdims=True), approx=True)

    # ---- attention output + head-merge folded into the output projection ----
    y = jnp.einsum('hqk,hkd->hqd', cast(p), cast(v),
                   preferred_element_type=jnp.float32)            # (H, T, hd)
    z = jnp.einsum('hqd,hdc->hqc', cast(y), cast(wp_ref[...]),
                   preferred_element_type=jnp.float32)            # (H, T, C)
    attn = jnp.sum(z, axis=0) + bp_ref[...]                       # (T, C)
    x1 = x + attn

    # ---- LN2 + MLP + residual ----
    h2 = _layer_norm(x1, ln2_g_ref[...], ln2_b_ref[...])
    m = jnp.dot(cast(h2), cast(w1_ref[...]),
                preferred_element_type=jnp.float32) + b1_ref[...]
    m = _gelu_exact(m)
    m = jnp.dot(cast(m), cast(w2_ref[...]),
                preferred_element_type=jnp.float32) + b2_ref[...]
    out_ref[0] = (x1 + m).astype(out_ref.dtype)


def transformer_block(x, params, n_head, *, compute_dtype=None):
    (ln1_g, ln1_b, wq, bq, wk, bk, wv, bv, wp, bp,
     ln2_g, ln2_b, w1, b1, w2, b2) = params
    B, T, C = x.shape
    H = w1.shape[1]
    hd = C // n_head
    scale = 1.0 / math.sqrt(hd)

    # ---- wrapper-side (free) weight prep: per-head split + scale folding ----
    wq_h = (wq * scale).reshape(C, n_head, hd).transpose(1, 0, 2)   # (H, C, hd)
    bq_h = (bq * scale).reshape(n_head, 1, hd)                      # (H, 1, hd)
    wk_h = wk.reshape(C, n_head, hd).transpose(1, 0, 2)
    bk_h = bk.reshape(n_head, 1, hd)
    wv_h = wv.reshape(C, n_head, hd).transpose(1, 0, 2)
    bv_h = bv.reshape(n_head, 1, hd)
    wp_h = wp.reshape(n_head, hd, C)                                # (H, hd, C)

    kernel_params = (ln1_g, ln1_b,
                     wq_h, bq_h, wk_h, bk_h, wv_h, bv_h,
                     wp_h, bp,
                     ln2_g, ln2_b,
                     w1, b1, w2, b2)

    full2 = lambda shape: pl.BlockSpec(shape, lambda b: (0, 0))
    full3 = lambda shape: pl.BlockSpec(shape, lambda b: (0, 0, 0))

    in_specs = [
        pl.BlockSpec((1, T, C), lambda b: (b, 0, 0)),   # x
        full2((1, C)), full2((1, C)),                   # ln1 gamma, beta
        full3((n_head, C, hd)), full3((n_head, 1, hd)), # Wq, bq  (per head, scale folded)
        full3((n_head, C, hd)), full3((n_head, 1, hd)), # Wk, bk
        full3((n_head, C, hd)), full3((n_head, 1, hd)), # Wv, bv
        full3((n_head, hd, C)), full2((1, C)),          # Wproj (per head), bproj
        full2((1, C)), full2((1, C)),                   # ln2 gamma, beta
        full2((C, H)), full2((1, H)),                   # W1, b1
        full2((H, C)), full2((1, C)),                   # W2, b2
    ]

    # ---- VMEM budget guard (cap at 64 MiB so the layout stays v7x-safe) ----
    weight_bytes = sum(int(p.size) * p.dtype.itemsize for p in kernel_params)
    act_bytes = 4 * (6 * T * C + 3 * n_head * T * hd
                     + 2 * n_head * T * T + n_head * T * C + 2 * T * H)
    vmem_limit = int(min(max(2 * weight_bytes + 2 * act_bytes + (8 << 20), 32 << 20),
                         64 << 20))

    return pl.pallas_call(
        functools.partial(block_kernel, n_head=n_head, compute_dtype=compute_dtype),
        out_shape=jax.ShapeDtypeStruct((B, T, C), x.dtype),
        grid_spec=pltpu.PrefetchScalarGridSpec(
            num_scalar_prefetch=0,
            grid=(B,),
            in_specs=in_specs,
            out_specs=pl.BlockSpec((1, T, C), lambda b: (b, 0, 0)),
        ),
        compiler_params=pltpu.CompilerParams(
            dimension_semantics=("parallel",),
            vmem_limit_bytes=vmem_limit),
    )(x, *kernel_params)


def reference_block(x, params, n_head):
    (ln1_g, ln1_b, wq, bq, wk, bk, wv, bv, wp, bp,
     ln2_g, ln2_b, w1, b1, w2, b2) = params
    B, T, C = x.shape
    hd = C // n_head

    h = _layer_norm(x, ln1_g, ln1_b)
    q = h @ wq + bq
    k = h @ wk + bk
    v = h @ wv + bv
    q = q.reshape(B, T, n_head, hd).transpose(0, 2, 1, 3)
    k = k.reshape(B, T, n_head, hd).transpose(0, 2, 1, 3)
    v = v.reshape(B, T, n_head, hd).transpose(0, 2, 1, 3)
    att = jnp.einsum("bhqd,bhkd->bhqk", q, k) / math.sqrt(hd)
    att = jax.nn.softmax(att, axis=-1)
    y = jnp.einsum("bhqk,bhkd->bhqd", att, v)
    y = y.transpose(0, 2, 1, 3).reshape(B, T, C)
    x1 = x + y @ wp + bp
    h2 = _layer_norm(x1, ln2_g, ln2_b)
    m = jax.nn.gelu(h2 @ w1 + b1, approximate=False)
    return x1 + m @ w2 + b2


if __name__ == "__main__":
    B, T, C, n_head = 2, 8, 32, 4
    H = 4 * C

    key = jax.random.PRNGKey(0)
    keys = jax.random.split(key, 20)

    def init(k, shape, scale=0.1):
        return jax.random.normal(k, shape, dtype=jnp.float32) * scale

    params = (
        jnp.ones((1, C), jnp.float32),          # ln1 gamma
        jnp.zeros((1, C), jnp.float32),         # ln1 beta
        init(keys[0], (C, C)), init(keys[1], (1, C)),   # Wq, bq  (stored as (in,out))
        init(keys[2], (C, C)), init(keys[3], (1, C)),   # Wk, bk
        init(keys[4], (C, C)), init(keys[5], (1, C)),   # Wv, bv
        init(keys[6], (C, C)), init(keys[7], (1, C)),   # Wproj, bproj
        jnp.ones((1, C), jnp.float32),          # ln2 gamma
        jnp.zeros((1, C), jnp.float32),         # ln2 beta
        init(keys[8], (C, H)), init(keys[9], (1, H)),   # W1, b1
        init(keys[10], (H, C)), init(keys[11], (1, C)), # W2, b2
    )

    x = jax.random.normal(keys[12], (B, T, C), dtype=jnp.float32)

    # compute_dtype=None keeps f32 matmul inputs for a tight correctness check;
    # pass jnp.bfloat16 on v6e/v7x for full MXU rate when accuracy budget allows.
    out = transformer_block(x, params, n_head, compute_dtype=None)
    out = jax.block_until_ready(out)

    ref = reference_block(x, params, n_head)
    assert out.shape == (B, T, C)
    assert jnp.allclose(out, ref, atol=2e-3, rtol=2e-3), "mismatch vs reference"

    print("KERNEL_OK")
</pallas_src>

<mosaic_0001>
module attributes {stable_mosaic.version = 11 : i64} {
  func.func @block_kernel(%arg0: i32, %arg1: memref<1x8x32xf32, #tpu.memory_space<vmem>>, %arg2: memref<1x32xf32, #tpu.memory_space<vmem>>, %arg3: memref<1x32xf32, #tpu.memory_space<vmem>>, %arg4: memref<4x32x8xf32, #tpu.memory_space<vmem>>, %arg5: memref<4x1x8xf32, #tpu.memory_space<vmem>>, %arg6: memref<4x32x8xf32, #tpu.memory_space<vmem>>, %arg7: memref<4x1x8xf32, #tpu.memory_space<vmem>>, %arg8: memref<4x32x8xf32, #tpu.memory_space<vmem>>, %arg9: memref<4x1x8xf32, #tpu.memory_space<vmem>>, %arg10: memref<4x8x32xf32, #tpu.memory_space<vmem>>, %arg11: memref<1x32xf32, #tpu.memory_space<vmem>>, %arg12: memref<1x32xf32, #tpu.memory_space<vmem>>, %arg13: memref<1x32xf32, #tpu.memory_space<vmem>>, %arg14: memref<32x128xf32, #tpu.memory_space<vmem>>, %arg15: memref<1x128xf32, #tpu.memory_space<vmem>>, %arg16: memref<128x32xf32, #tpu.memory_space<vmem>>, %arg17: memref<1x32xf32, #tpu.memory_space<vmem>>, %arg18: memref<1x8x32xf32, #tpu.memory_space<vmem>>) attributes {dimension_semantics = [#tpu.dimension_semantics<parallel>], iteration_bounds = array<i64: 2>, scalar_prefetch = 0 : i64, scratch_operands = 0 : i64, tpu.core_type = #tpu.core_type<tc>, window_params = [{transform_indices = @transform_0, window_bounds = array<i64: 1, 8, 32>}, {pipeline_mode = #tpu.pipeline_mode<synchronous>, transform_indices = @transform_1, window_bounds = array<i64: 1, 32>}, {pipeline_mode = #tpu.pipeline_mode<synchronous>, transform_indices = @transform_2, window_bounds = array<i64: 1, 32>}, {pipeline_mode = #tpu.pipeline_mode<synchronous>, transform_indices = @transform_3, window_bounds = array<i64: 4, 32, 8>}, {pipeline_mode = #tpu.pipeline_mode<synchronous>, transform_indices = @transform_4, window_bounds = array<i64: 4, 1, 8>}, {pipeline_mode = #tpu.pipeline_mode<synchronous>, transform_indices = @transform_5, window_bounds = array<i64: 4, 32, 8>}, {pipeline_mode = #tpu.pipeline_mode<synchronous>, transform_indices = @transform_6, window_bounds = array<i64: 4, 1, 8>}, {pipeline_mode = #tpu.pipeline_mode<synchronous>, transform_indices = @transform_7, window_bounds = array<i64: 4, 32, 8>}, {pipeline_mode = #tpu.pipeline_mode<synchronous>, transform_indices = @transform_8, window_bounds = array<i64: 4, 1, 8>}, {pipeline_mode = #tpu.pipeline_mode<synchronous>, transform_indices = @transform_9, window_bounds = array<i64: 4, 8, 32>}, {pipeline_mode = #tpu.pipeline_mode<synchronous>, transform_indices = @transform_10, window_bounds = array<i64: 1, 32>}, {pipeline_mode = #tpu.pipeline_mode<synchronous>, transform_indices = @transform_11, window_bounds = array<i64: 1, 32>}, {pipeline_mode = #tpu.pipeline_mode<synchronous>, transform_indices = @transform_12, window_bounds = array<i64: 1, 32>}, {pipeline_mode = #tpu.pipeline_mode<synchronous>, transform_indices = @transform_13, window_bounds = array<i64: 32, 128>}, {pipeline_mode = #tpu.pipeline_mode<synchronous>, transform_indices = @transform_14, window_bounds = array<i64: 1, 128>}, {pipeline_mode = #tpu.pipeline_mode<synchronous>, transform_indices = @transform_15, window_bounds = array<i64: 128, 32>}, {pipeline_mode = #tpu.pipeline_mode<synchronous>, transform_indices = @transform_16, window_bounds = array<i64: 1, 32>}, {transform_indices = @transform_17, window_bounds = array<i64: 1, 8, 32>}]} {
    %c0 = arith.constant 0 : index
    %c0_0 = arith.constant 0 : index
    %c0_1 = arith.constant 0 : index
    %0 = vector.load %arg1[%c0, %c0_0, %c0_1] : memref<1x8x32xf32, #tpu.memory_space<vmem>>, vector<1x8x32xf32>
    %1 = vector.shape_cast %0 : vector<1x8x32xf32> to vector<8x32xf32>
    %c0_2 = arith.constant 0 : index
    %c0_3 = arith.constant 0 : index
    %2 = vector.load %arg2[%c0_2, %c0_3] : memref<1x32xf32, #tpu.memory_space<vmem>>, vector<1x32xf32>
    %c0_4 = arith.constant 0 : index
    %c0_5 = arith.constant 0 : index
    %3 = vector.load %arg3[%c0_4, %c0_5] : memref<1x32xf32, #tpu.memory_space<vmem>>, vector<1x32xf32>
    %cst = arith.constant dense<0.000000e+00> : vector<8xf32>
    %4 = vector.multi_reduction <add>, %1, %cst [1] : vector<8x32xf32> to vector<8xf32>
    %5 = vector.shape_cast %4 : vector<8xf32> to vector<8x1xf32>
    %cst_6 = arith.constant 3.200000e+01 : f32
    %6 = vector.broadcast %cst_6 : f32 to vector<8x1xf32>
    %7 = arith.divf %5, %6 : vector<8x1xf32>
    %8 = vector.broadcast %7 : vector<8x1xf32> to vector<8x32xf32>
    %9 = arith.subf %1, %8 : vector<8x32xf32>
    %10 = arith.mulf %9, %9 : vector<8x32xf32>
    %cst_7 = arith.constant dense<0.000000e+00> : vector<8xf32>
    %11 = vector.multi_reduction <add>, %10, %cst_7 [1] : vector<8x32xf32> to vector<8xf32>
    %12 = vector.shape_cast %11 : vector<8xf32> to vector<8x1xf32>
    %cst_8 = arith.constant 3.200000e+01 : f32
    %13 = vector.broadcast %cst_8 : f32 to vector<8x1xf32>
    %14 = arith.divf %12, %13 : vector<8x1xf32>
    %15 = vector.broadcast %7 : vector<8x1xf32> to vector<8x32xf32>
    %16 = arith.subf %1, %15 : vector<8x32xf32>
    %cst_9 = arith.constant 9.99999974E-6 : f32
    %17 = vector.broadcast %cst_9 : f32 to vector<8x1xf32>
    %18 = arith.addf %14, %17 : vector<8x1xf32>
    %19 = math.rsqrt %18 : vector<8x1xf32>
    %20 = vector.broadcast %19 : vector<8x1xf32> to vector<8x32xf32>
    %21 = arith.mulf %16, %20 : vector<8x32xf32>
    %22 = vector.broadcast %2 : vector<1x32xf32> to vector<8x32xf32>
    %23 = arith.mulf %21, %22 : vector<8x32xf32>
    %24 = vector.broadcast %3 : vector<1x32xf32> to vector<8x32xf32>
    %25 = arith.addf %23, %24 : vector<8x32xf32>
    %26 = vector.shape_cast %25 : vector<8x32xf32> to vector<1x8x32xf32>
    %27 = vector.shape_cast %26 : vector<1x8x32xf32> to vector<1x8x32xf32>
    %28 = vector.broadcast %27 : vector<1x8x32xf32> to vector<4x8x32xf32>
    %c0_10 = arith.constant 0 : index
    %c0_11 = arith.constant 0 : index
    %c0_12 = arith.constant 0 : index
    %29 = vector.load %arg4[%c0_10, %c0_11, %c0_12] : memref<4x32x8xf32, #tpu.memory_space<vmem>>, vector<4x32x8xf32>
    "tpu.trace_start"() <{level = 10 : i32, message = "htc,hcd->htd"}> : () -> ()
    %cst_13 = arith.constant dense<0.000000e+00> : vector<4x8x8xf32>
    %30 = tpu.matmul %28, %29, %cst_13 {dimension_numbers = #tpu.dot_dimension_numbers<[2], [1], [1], [2], [0, 0, 0, 1, 1, 2], [0], [0]>} : vector<4x8x32xf32>, vector<4x32x8xf32>, vector<4x8x8xf32> -> vector<4x8x8xf32>
    "tpu.trace_stop"() : () -> ()
    %c0_14 = arith.constant 0 : index
    %c0_15 = arith.constant 0 : index
    %c0_16 = arith.constant 0 : index
    %31 = vector.load %arg5[%c0_14, %c0_15, %c0_16] : memref<4x1x8xf32, #tpu.memory_space<vmem>>, vector<4x1x8xf32>
    %32 = vector.broadcast %31 : vector<4x1x8xf32> to vector<4x8x8xf32>
    %33 = arith.addf %30, %32 : vector<4x8x8xf32>
    %c0_17 = arith.constant 0 : index
    %c0_18 = arith.constant 0 : index
    %c0_19 = arith.constant 0 : index
    %34 = vector.load %arg6[%c0_17, %c0_18, %c0_19] : memref<4x32x8xf32, #tpu.memory_space<vmem>>, vector<4x32x8xf32>
    "tpu.trace_start"() <{level = 10 : i32, message = "htc,hcd->htd"}> : () -> ()
    %cst_20 = arith.constant dense<0.000000e+00> : vector<4x8x8xf32>
    %35 = tpu.matmul %28, %34, %cst_20 {dimension_numbers = #tpu.dot_dimension_numbers<[2], [1], [1], [2], [0, 0, 0, 1, 1, 2], [0], [0]>} : vector<4x8x32xf32>, vector<4x32x8xf32>, vector<4x8x8xf32> -> vector<4x8x8xf32>
    "tpu.trace_stop"() : () -> ()
    %c0_21 = arith.constant 0 : index
    %c0_22 = arith.constant 0 : index
    %c0_23 = arith.constant 0 : index
    %36 = vector.load %arg7[%c0_21, %c0_22, %c0_23] : memref<4x1x8xf32, #tpu.memory_space<vmem>>, vector<4x1x8xf32>
    %37 = vector.broadcast %36 : vector<4x1x8xf32> to vector<4x8x8xf32>
    %38 = arith.addf %35, %37 : vector<4x8x8xf32>
    %c0_24 = arith.constant 0 : index
    %c0_25 = arith.constant 0 : index
    %c0_26 = arith.constant 0 : index
    %39 = vector.load %arg8[%c0_24, %c0_25, %c0_26] : memref<4x32x8xf32, #tpu.memory_space<vmem>>, vector<4x32x8xf32>
    "tpu.trace_start"() <{level = 10 : i32, message = "htc,hcd->htd"}> : () -> ()
    %cst_27 = arith.constant dense<0.000000e+00> : vector<4x8x8xf32>
    %40 = tpu.matmul %28, %39, %cst_27 {dimension_numbers = #tpu.dot_dimension_numbers<[2], [1], [1], [2], [0, 0, 0, 1, 1, 2], [0], [0]>} : vector<4x8x32xf32>, vector<4x32x8xf32>, vector<4x8x8xf32> -> vector<4x8x8xf32>
    "tpu.trace_stop"() : () -> ()
    %c0_28 = arith.constant 0 : index
    %c0_29 = arith.constant 0 : index
    %c0_30 = arith.constant 0 : index
    %41 = vector.load %arg9[%c0_28, %c0_29, %c0_30] : memref<4x1x8xf32, #tpu.memory_space<vmem>>, vector<4x1x8xf32>
    %42 = vector.broadcast %41 : vector<4x1x8xf32> to vector<4x8x8xf32>
    %43 = arith.addf %40, %42 : vector<4x8x8xf32>
    "tpu.trace_start"() <{level = 10 : i32, message = "hqd,hkd->hqk"}> : () -> ()
    %cst_31 = arith.constant dense<0.000000e+00> : vector<4x8x8xf32>
    %44 = tpu.matmul %33, %38, %cst_31 {dimension_numbers = #tpu.dot_dimension_numbers<[2], [2], [1], [1], [0, 0, 0, 1, 1, 1], [0], [0]>} : vector<4x8x8xf32>, vector<4x8x8xf32>, vector<4x8x8xf32> -> vector<4x8x8xf32>
    "tpu.trace_stop"() : () -> ()
    %cst_32 = arith.constant dense<0xFF800000> : vector<4x8xf32>
    %45 = vector.multi_reduction <maximumf>, %44, %cst_32 [2] : vector<4x8x8xf32> to vector<4x8xf32>
    %46 = vector.shape_cast %45 : vector<4x8xf32> to vector<4x8x1xf32>
    %47 = vector.broadcast %46 : vector<4x8x1xf32> to vector<4x8x8xf32>
    %48 = arith.subf %44, %47 : vector<4x8x8xf32>
    %49 = math.exp %48 : vector<4x8x8xf32>
    %cst_33 = arith.constant dense<0.000000e+00> : vector<4x8xf32>
    %50 = vector.multi_reduction <add>, %49, %cst_33 [2] : vector<4x8x8xf32> to vector<4x8xf32>
    %51 = vector.shape_cast %50 : vector<4x8xf32> to vector<4x8x1xf32>
    %52 = tpu.reciprocal %51 {approx = true} : vector<4x8x1xf32> -> vector<4x8x1xf32>
    %53 = vector.broadcast %52 : vector<4x8x1xf32> to vector<4x8x8xf32>
    %54 = arith.mulf %49, %53 : vector<4x8x8xf32>
    "tpu.trace_start"() <{level = 10 : i32, message = "hqk,hkd->hqd"}> : () -> ()
    %cst_34 = arith.constant dense<0.000000e+00> : vector<4x8x8xf32>
    %55 = tpu.matmul %54, %43, %cst_34 {dimension_numbers = #tpu.dot_dimension_numbers<[2], [1], [1], [2], [0, 0, 0, 1, 1, 2], [0], [0]>} : vector<4x8x8xf32>, vector<4x8x8xf32>, vector<4x8x8xf32> -> vector<4x8x8xf32>
    "tpu.trace_stop"() : () -> ()
    %c0_35 = arith.constant 0 : index
    %c0_36 = arith.constant 0 : index
    %c0_37 = arith.constant 0 : index
    %56 = vector.load %arg10[%c0_35, %c0_36, %c0_37] : memref<4x8x32xf32, #tpu.memory_space<vmem>>, vector<4x8x32xf32>
    "tpu.trace_start"() <{level = 10 : i32, message = "hqd,hdc->hqc"}> : () -> ()
    %cst_38 = arith.constant dense<0.000000e+00> : vector<4x8x32xf32>
    %57 = tpu.matmul %55, %56, %cst_38 {dimension_numbers = #tpu.dot_dimension_numbers<[2], [1], [1], [2], [0, 0, 0, 1, 1, 2], [0], [0]>} : vector<4x8x8xf32>, vector<4x8x32xf32>, vector<4x8x32xf32> -> vector<4x8x32xf32>
    "tpu.trace_stop"() : () -> ()
    %cst_39 = arith.constant dense<0.000000e+00> : vector<8x32xf32>
    %58 = vector.multi_reduction <add>, %57, %cst_39 [0] : vector<4x8x32xf32> to vector<8x32xf32>
    %c0_40 = arith.constant 0 : index
    %c0_41 = arith.constant 0 : index
    %59 = vector.load %arg11[%c0_40, %c0_41] : memref<1x32xf32, #tpu.memory_space<vmem>>, vector<1x32xf32>
    %60 = vector.broadcast %59 : vector<1x32xf32> to vector<8x32xf32>
    %61 = arith.addf %58, %60 : vector<8x32xf32>
    %62 = arith.addf %1, %61 : vector<8x32xf32>
    %c0_42 = arith.constant 0 : index
    %c0_43 = arith.constant 0 : index
    %63 = vector.load %arg12[%c0_42, %c0_43] : memref<1x32xf32, #tpu.memory_space<vmem>>, vector<1x32xf32>
    %c0_44 = arith.constant 0 : index
    %c0_45 = arith.constant 0 : index
    %64 = vector.load %arg13[%c0_44, %c0_45] : memref<1x32xf32, #tpu.memory_space<vmem>>, vector<1x32xf32>
    %cst_46 = arith.constant dense<0.000000e+00> : vector<8xf32>
    %65 = vector.multi_reduction <add>, %62, %cst_46 [1] : vector<8x32xf32> to vector<8xf32>
    %66 = vector.shape_cast %65 : vector<8xf32> to vector<8x1xf32>
    %cst_47 = arith.constant 3.200000e+01 : f32
    %67 = vector.broadcast %cst_47 : f32 to vector<8x1xf32>
    %68 = arith.divf %66, %67 : vector<8x1xf32>
    %69 = vector.broadcast %68 : vector<8x1xf32> to vector<8x32xf32>
    %70 = arith.subf %62, %69 : vector<8x32xf32>
    %71 = arith.mulf %70, %70 : vector<8x32xf32>
    %cst_48 = arith.constant dense<0.000000e+00> : vector<8xf32>
    %72 = vector.multi_reduction <add>, %71, %cst_48 [1] : vector<8x32xf32> to vector<8xf32>
    %73 = vector.shape_cast %72 : vector<8xf32> to vector<8x1xf32>
    %cst_49 = arith.constant 3.200000e+01 : f32
    %74 = vector.broadcast %cst_49 : f32 to vector<8x1xf32>
    %75 = arith.divf %73, %74 : vector<8x1xf32>
    %76 = vector.broadcast %68 : vector<8x1xf32> to vector<8x32xf32>
    %77 = arith.subf %62, %76 : vector<8x32xf32>
    %cst_50 = arith.constant 9.99999974E-6 : f32
    %78 = vector.broadcast %cst_50 : f32 to vector<8x1xf32>
    %79 = arith.addf %75, %78 : vector<8x1xf32>
    %80 = math.rsqrt %79 : vector<8x1xf32>
    %81 = vector.broadcast %80 : vector<8x1xf32> to vector<8x32xf32>
    %82 = arith.mulf %77, %81 : vector<8x32xf32>
    %83 = vector.broadcast %63 : vector<1x32xf32> to vector<8x32xf32>
    %84 = arith.mulf %82, %83 : vector<8x32xf32>
    %85 = vector.broadcast %64 : vector<1x32xf32> to vector<8x32xf32>
    %86 = arith.addf %84, %85 : vector<8x32xf32>
    %c0_51 = arith.constant 0 : index
    %c0_52 = arith.constant 0 : index
    %87 = vector.load %arg14[%c0_51, %c0_52] : memref<32x128xf32, #tpu.memory_space<vmem>>, vector<32x128xf32>
    %cst_53 = arith.constant dense<0.000000e+00> : vector<8x128xf32>
    %88 = tpu.matmul %86, %87, %cst_53 {dimension_numbers = #tpu.dot_dimension_numbers<[1], [0], [0], [1], [0, 0, 1, 1], [], []>} : vector<8x32xf32>, vector<32x128xf32>, vector<8x128xf32> -> vector<8x128xf32>
    %c0_54 = arith.constant 0 : index
    %c0_55 = arith.constant 0 : index
    %89 = vector.load %arg15[%c0_54, %c0_55] : memref<1x128xf32, #tpu.memory_space<vmem>>, vector<1x128xf32>
    %90 = vector.broadcast %89 : vector<1x128xf32> to vector<8x128xf32>
    %91 = arith.addf %88, %90 : vector<8x128xf32>
    %cst_56 = arith.constant 5.000000e-01 : f32
    %92 = vector.broadcast %cst_56 : f32 to vector<8x128xf32>
    %93 = arith.mulf %92, %91 : vector<8x128xf32>
    %cst_57 = arith.constant 2.000000e+00 : f32
    %94 = math.sqrt %cst_57 : f32
    %95 = vector.broadcast %94 : f32 to vector<8x128xf32>
    %96 = arith.divf %91, %95 : vector<8x128xf32>
    %97 = math.erf %96 : vector<8x128xf32>
    %cst_58 = arith.constant 1.000000e+00 : f32
    %98 = vector.broadcast %cst_58 : f32 to vector<8x128xf32>
    %99 = arith.addf %98, %97 : vector<8x128xf32>
    %100 = arith.mulf %93, %99 : vector<8x128xf32>
    %c0_59 = arith.constant 0 : index
    %c0_60 = arith.constant 0 : index
    %101 = vector.load %arg16[%c0_59, %c0_60] : memref<128x32xf32, #tpu.memory_space<vmem>>, vector<128x32xf32>
    %cst_61 = arith.constant dense<0.000000e+00> : vector<8x32xf32>
    %102 = tpu.matmul %100, %101, %cst_61 {dimension_numbers = #tpu.dot_dimension_numbers<[1], [0], [0], [1], [0, 0, 1, 1], [], []>} : vector<8x128xf32>, vector<128x32xf32>, vector<8x32xf32> -> vector<8x32xf32>
    %c0_62 = arith.constant 0 : index
    %c0_63 = arith.constant 0 : index
    %103 = vector.load %arg17[%c0_62, %c0_63] : memref<1x32xf32, #tpu.memory_space<vmem>>, vector<1x32xf32>
    %104 = vector.broadcast %103 : vector<1x32xf32> to vector<8x32xf32>
    %105 = arith.addf %102, %104 : vector<8x32xf32>
    %106 = arith.addf %62, %105 : vector<8x32xf32>
    %c0_64 = arith.constant 0 : index
    %c0_65 = arith.constant 0 : index
    %c0_66 = arith.constant 0 : index
    %107 = vector.load %arg18[%c0_64, %c0_65, %c0_66] : memref<1x8x32xf32, #tpu.memory_space<vmem>>, vector<1x8x32xf32>
    %108 = vector.shape_cast %107 : vector<1x8x32xf32> to vector<8x32xf32>
    %109 = vector.shape_cast %106 : vector<8x32xf32> to vector<1x8x32xf32>
    tpu.vector_store %arg18[%c0_64, %c0_65, %c0_66], %109 {strides = array<i32>} : memref<1x8x32xf32, #tpu.memory_space<vmem>>, vector<1x8x32xf32>,
    return
  }
  func.func @transform_0(%arg0: i32) -> (i32, i32, i32) {
    %c0_i32 = arith.constant 0 : i32
    %c0_i32_0 = arith.constant 0 : i32
    %c0_i32_1 = arith.constant 0 : i32
    return %arg0, %c0_i32, %c0_i32_0 : i32, i32, i32
  }
  func.func @transform_1(%arg0: i32) -> (i32, i32) {
    %c0_i32 = arith.constant 0 : i32
    %c0_i32_0 = arith.constant 0 : i32
    %c0_i32_1 = arith.constant 0 : i32
    return %c0_i32, %c0_i32_0 : i32, i32
  }
  func.func @transform_2(%arg0: i32) -> (i32, i32) {
    %c0_i32 = arith.constant 0 : i32
    %c0_i32_0 = arith.constant 0 : i32
    %c0_i32_1 = arith.constant 0 : i32
    return %c0_i32, %c0_i32_0 : i32, i32
  }
  func.func @transform_3(%arg0: i32) -> (i32, i32, i32) {
    %c0_i32 = arith.constant 0 : i32
    %c0_i32_0 = arith.constant 0 : i32
    %c0_i32_1 = arith.constant 0 : i32
    %c0_i32_2 = arith.constant 0 : i32
    return %c0_i32, %c0_i32_0, %c0_i32_1 : i32, i32, i32
  }
  func.func @transform_4(%arg0: i32) -> (i32, i32, i32) {
    %c0_i32 = arith.constant 0 : i32
    %c0_i32_0 = arith.constant 0 : i32
    %c0_i32_1 = arith.constant 0 : i32
    %c0_i32_2 = arith.constant 0 : i32
    return %c0_i32, %c0_i32_0, %c0_i32_1 : i32, i32, i32
  }
  func.func @transform_5(%arg0: i32) -> (i32, i32, i32) {
    %c0_i32 = arith.constant 0 : i32
    %c0_i32_0 = arith.constant 0 : i32
    %c0_i32_1 = arith.constant 0 : i32
    %c0_i32_2 = arith.constant 0 : i32
    return %c0_i32, %c0_i32_0, %c0_i32_1 : i32, i32, i32
  }
  func.func @transform_6(%arg0: i32) -> (i32, i32, i32) {
    %c0_i32 = arith.constant 0 : i32
    %c0_i32_0 = arith.constant 0 : i32
    %c0_i32_1 = arith.constant 0 : i32
    %c0_i32_2 = arith.constant 0 : i32
    return %c0_i32, %c0_i32_0, %c0_i32_1 : i32, i32, i32
  }
  func.func @transform_7(%arg0: i32) -> (i32, i32, i32) {
    %c0_i32 = arith.constant 0 : i32
    %c0_i32_0 = arith.constant 0 : i32
    %c0_i32_1 = arith.constant 0 : i32
    %c0_i32_2 = arith.constant 0 : i32
    return %c0_i32, %c0_i32_0, %c0_i32_1 : i32, i32, i32
  }
  func.func @transform_8(%arg0: i32) -> (i32, i32, i32) {
    %c0_i32 = arith.constant 0 : i32
    %c0_i32_0 = arith.constant 0 : i32
    %c0_i32_1 = arith.constant 0 : i32
    %c0_i32_2 = arith.constant 0 : i32
    return %c0_i32, %c0_i32_0, %c0_i32_1 : i32, i32, i32
  }
  func.func @transform_9(%arg0: i32) -> (i32, i32, i32) {
    %c0_i32 = arith.constant 0 : i32
    %c0_i32_0 = arith.constant 0 : i32
    %c0_i32_1 = arith.constant 0 : i32
    %c0_i32_2 = arith.constant 0 : i32
    return %c0_i32, %c0_i32_0, %c0_i32_1 : i32, i32, i32
  }
  func.func @transform_10(%arg0: i32) -> (i32, i32) {
    %c0_i32 = arith.constant 0 : i32
    %c0_i32_0 = arith.constant 0 : i32
    %c0_i32_1 = arith.constant 0 : i32
    return %c0_i32, %c0_i32_0 : i32, i32
  }
  func.func @transform_11(%arg0: i32) -> (i32, i32) {
    %c0_i32 = arith.constant 0 : i32
    %c0_i32_0 = arith.constant 0 : i32
    %c0_i32_1 = arith.constant 0 : i32
    return %c0_i32, %c0_i32_0 : i32, i32
  }
  func.func @transform_12(%arg0: i32) -> (i32, i32) {
    %c0_i32 = arith.constant 0 : i32
    %c0_i32_0 = arith.constant 0 : i32
    %c0_i32_1 = arith.constant 0 : i32
    return %c0_i32, %c0_i32_0 : i32, i32
  }
  func.func @transform_13(%arg0: i32) -> (i32, i32) {
    %c0_i32 = arith.constant 0 : i32
    %c0_i32_0 = arith.constant 0 : i32
    %c0_i32_1 = arith.constant 0 : i32
    return %c0_i32, %c0_i32_0 : i32, i32
  }
  func.func @transform_14(%arg0: i32) -> (i32, i32) {
    %c0_i32 = arith.constant 0 : i32
    %c0_i32_0 = arith.constant 0 : i32
    %c0_i32_1 = arith.constant 0 : i32
    return %c0_i32, %c0_i32_0 : i32, i32
  }
  func.func @transform_15(%arg0: i32) -> (i32, i32) {
    %c0_i32 = arith.constant 0 : i32
    %c0_i32_0 = arith.constant 0 : i32
    %c0_i32_1 = arith.constant 0 : i32
    return %c0_i32, %c0_i32_0 : i32, i32
  }
  func.func @transform_16(%arg0: i32) -> (i32, i32) {
    %c0_i32 = arith.constant 0 : i32
    %c0_i32_0 = arith.constant 0 : i32
    %c0_i32_1 = arith.constant 0 : i32
    return %c0_i32, %c0_i32_0 : i32, i32
  }
  func.func @transform_17(%arg0: i32) -> (i32, i32, i32) {
    %c0_i32 = arith.constant 0 : i32
    %c0_i32_0 = arith.constant 0 : i32
    %c0_i32_1 = arith.constant 0 : i32
    return %arg0, %c0_i32, %c0_i32_0 : i32, i32, i32
  }
}

</mosaic_0001>

<llo_original>
// kernel: tpu_custom_call.1
$region0: #{tpu_custom_call.1}
  #allocation0 [shape = 'u32[]', space=smem, size = 0x4, offset = 0x4, fixed_abs, tag = 'smem constant byte address 0x4 - core index']
  #allocation1 [shape = 'u32[144,128]{1,0:T(1,128)}', space=vmem, size = 0x12000, scoped, tag = 'internal scratch']
  %s0 = inlined_call_operand.vmem [shape: f32[2,8,32], index: 0, kind: input, shape index: {}]
  %s1 = inlined_call_operand.vmem [shape: f32[1,32], index: 1, kind: input, shape index: {}]
  %s2 = inlined_call_operand.vmem [shape: f32[1,32], index: 2, kind: input, shape index: {}]
  %s3 = inlined_call_operand.vmem [shape: f32[4,32,8], index: 3, kind: input, shape index: {}]
  %s4 = inlined_call_operand.vmem [shape: f32[4,1,8], index: 4, kind: input, shape index: {}]
  %s5 = inlined_call_operand.vmem [shape: f32[4,32,8], index: 5, kind: input, shape index: {}]
  %s6 = inlined_call_operand.vmem [shape: f32[4,1,8], index: 6, kind: input, shape index: {}]
  %s7 = inlined_call_operand.vmem [shape: f32[4,32,8], index: 7, kind: input, shape index: {}]
  %s8 = inlined_call_operand.vmem [shape: f32[4,1,8], index: 8, kind: input, shape index: {}]
  %s9 = inlined_call_operand.vmem [shape: f32[4,8,32], index: 9, kind: input, shape index: {}]
  %s10 = inlined_call_operand.vmem [shape: f32[1,32], index: 10, kind: input, shape index: {}]
  %s11 = inlined_call_operand.vmem [shape: f32[1,32], index: 11, kind: input, shape index: {}]
  %s12 = inlined_call_operand.vmem [shape: f32[1,32], index: 12, kind: input, shape index: {}]
  %s13 = inlined_call_operand.vmem [shape: f32[32,128], index: 13, kind: input, shape index: {}]
  %s14 = inlined_call_operand.vmem [shape: f32[1,128], index: 14, kind: input, shape index: {}]
  %s15 = inlined_call_operand.vmem [shape: f32[128,32], index: 15, kind: input, shape index: {}]
  %s16 = inlined_call_operand.vmem [shape: f32[1,32], index: 16, kind: input, shape index: {}]
  %s17 = inlined_call_operand.hbm [shape: f32[2,8,32], index: 17, kind: output, shape index: {}]
  %s18 = sld [smem:[#allocation0]]
  $region101: #{tpu_custom_call.1} parent=0
    _
  %s20 = ssub.s32 1, %s18
  %s21 = scalar_select 0, %s20, %s18
  $region1: #{tpu_custom_call.1} parent=0
    #allocation2 [shape = 'u8[8192]{0}', space=vmem, size = 0x2000, scoped, tag = 'output window, operand 0']
    #allocation3 [shape = 's32[2]{0}', space=sflag, size = 0x8, scoped, tag = 'scoped memory for tpu_custom_call.1']
    %22 = vsyncpa [#allocation3], 0
    %s23 = scalar_lea.sflag [#allocation3], 1
    %24 = vsyncpa %s23, 0
    loop: start=0, step=1, limit=4
    $region2: #{tpu_custom_call.1} parent=1 // loop_pre_header
      _
    $region3: #{tpu_custom_call.1} parent=1 // loop_header
      %s26 = sphi 0, %s30
      %p27 = scmp.ge.s32.totalorder %s26, 4
      %s36 = sphi 0, %s38
      %s39 = sphi 0, %s36
      %s40 = sphi 0, %s39
      %s56 = sphi 0, %s40
      %s60 = sphi 0, %s60
      %s62 = sphi 0, %s60
      %s63 = sphi 0, %s62
      %s77 = sphi 0, %s63
      %s81 = sphi 0, %s81
      %s83 = sphi 0, %s81
      %s84 = sphi 0, %s83
      %s98 = sphi 0, %s84
      %s102 = sphi 0, %s102
      %s104 = sphi 0, %s102
      %s105 = sphi 0, %s104
      %s119 = sphi 0, %s105
      %s123 = sphi 0, %s123
      %s125 = sphi 0, %s123
      %s126 = sphi 0, %s125
      %s140 = sphi 0, %s126
      %s144 = sphi 0, %s144
      %s146 = sphi 0, %s144
      %s147 = sphi 0, %s146
      %s161 = sphi 0, %s147
      %s165 = sphi 0, %s165
      %s167 = sphi 0, %s165
      %s168 = sphi 0, %s167
      %s182 = sphi 0, %s168
      %s186 = sphi 0, %s186
      %s188 = sphi 0, %s186
      %s189 = sphi 0, %s188
      %s203 = sphi 0, %s189
      %s207 = sphi 0, %s207
      %s209 = sphi 0, %s207
      %s210 = sphi 0, %s209
      %s224 = sphi 0, %s210
      %s228 = sphi 0, %s228
      %s230 = sphi 0, %s228
      %s231 = sphi 0, %s230
      %s245 = sphi 0, %s231
      %s249 = sphi 0, %s249
      %s251 = sphi 0, %s249
      %s252 = sphi 0, %s251
      %s266 = sphi 0, %s252
      %s270 = sphi 0, %s270
      %s272 = sphi 0, %s270
      %s273 = sphi 0, %s272
      %s287 = sphi 0, %s273
      %s291 = sphi 0, %s291
      %s293 = sphi 0, %s291
      %s294 = sphi 0, %s293
      %s308 = sphi 0, %s294
      %s312 = sphi 0, %s312
      %s314 = sphi 0, %s312
      %s315 = sphi 0, %s314
      %s329 = sphi 0, %s315
      %s333 = sphi 0, %s333
      %s335 = sphi 0, %s333
      %s336 = sphi 0, %s335
      %s350 = sphi 0, %s336
      %s354 = sphi 0, %s354
      %s356 = sphi 0, %s354
      %s357 = sphi 0, %s356
      %s371 = sphi 0, %s357
      %s375 = sphi 0, %s375
      %s377 = sphi 0, %s375
      %s378 = sphi 0, %s377
      %s392 = sphi 0, %s378
      %s398 = sphi 0, %s400
      %s401 = sphi 0, %s398
      %s402 = sphi 0, %s401
      %s418 = sphi 0, %s402
    $region4: #{tpu_custom_call.1} parent=1 // loop_header_branch
      %29 = sbr.rel (%p27) target = $region8
    $region5: #{tpu_custom_call.1} parent=1 // loop_body
      %s31 = ssub.s32 %s26, 1
      %s32 = ssub.s32 %s26, 2
      %s33 = sadd.s32 %s26, 1
      %s34 = ssub.s32 %s26, %s33
      %p35 = scmp.eq.s32.totalorder %s34, 0
      %s37 = sadd.s32 %s36, 1
      %s38 = scalar_select %p35, %s36, %s37
      %p41 = pneg %p35
      %p42 = scmp.eq.s32.totalorder %s26, 1
      %p43 = por %p41, %p42
      %p44 = scmp.ne.s32.totalorder %s36, %s39
      %p45 = scmp.eq.s32.totalorder %s26, 0
      %p46 = por %p44, %p45
      %p47 = scmp.ne.s32.totalorder %s36, %s39
      %p48 = scmp.eq.s32.totalorder %s31, 1
      %p49 = por %p47, %p48
      %p50 = scmp.ne.s32.totalorder %s39, %s40
      %p51 = scmp.eq.s32.totalorder %s31, 0
      %p52 = por %p50, %p51
      %p53 = scmp.ne.s32.totalorder %s39, %s40
      %p54 = scmp.eq.s32.totalorder %s32, 1
      %p55 = por %p53, %p54
      %p57 = scmp.ne.s32.totalorder %s40, %s56
      %p58 = scmp.eq.s32.totalorder %s32, 0
      %p59 = por %p57, %p58
      %s61 = sadd.s32 %s60, 1
      %p64 = scmp.eq.s32.totalorder %s26, 1
      %p65 = scmp.ne.s32.totalorder %s60, %s62
      %p66 = scmp.eq.s32.totalorder %s26, 0
      %p67 = por %p65, %p66
      %p68 = scmp.ne.s32.totalorder %s60, %s62
      %p69 = scmp.eq.s32.totalorder %s31, 1
      %p70 = por %p68, %p69
      %p71 = scmp.ne.s32.totalorder %s62, %s63
      %p72 = scmp.eq.s32.totalorder %s31, 0
      %p73 = por %p71, %p72
      %p74 = scmp.ne.s32.totalorder %s62, %s63
      %p75 = scmp.eq.s32.totalorder %s32, 1
      %p76 = por %p74, %p75
      %p78 = scmp.ne.s32.totalorder %s63, %s77
      %p79 = scmp.eq.s32.totalorder %s32, 0
      %p80 = por %p78, %p79
      %s82 = sadd.s32 %s81, 1
      %p85 = scmp.eq.s32.totalorder %s26, 1
      %p86 = scmp.ne.s32.totalorder %s81, %s83
      %p87 = scmp.eq.s32.totalorder %s26, 0
      %p88 = por %p86, %p87
      %p89 = scmp.ne.s32.totalorder %s81, %s83
      %p90 = scmp.eq.s32.totalorder %s31, 1
      %p91 = por %p89, %p90
      %p92 = scmp.ne.s32.totalorder %s83, %s84
      %p93 = scmp.eq.s32.totalorder %s31, 0
      %p94 = por %p92, %p93
      %p95 = scmp.ne.s32.totalorder %s83, %s84
      %p96 = scmp.eq.s32.totalorder %s32, 1
      %p97 = por %p95, %p96
      %p99 = scmp.ne.s32.totalorder %s84, %s98
      %p100 = scmp.eq.s32.totalorder %s32, 0
      %p101 = por %p99, %p100
      %s103 = sadd.s32 %s102, 1
      %p106 = scmp.eq.s32.totalorder %s26, 1
      %p107 = scmp.ne.s32.totalorder %s102, %s104
      %p108 = scmp.eq.s32.totalorder %s26, 0
      %p109 = por %p107, %p108
      %p110 = scmp.ne.s32.totalorder %s102, %s104
      %p111 = scmp.eq.s32.totalorder %s31, 1
      %p112 = por %p110, %p111
      %p113 = scmp.ne.s32.totalorder %s104, %s105
      %p114 = scmp.eq.s32.totalorder %s31, 0
      %p115 = por %p113, %p114
      %p116 = scmp.ne.s32.totalorder %s104, %s105
      %p117 = scmp.eq.s32.totalorder %s32, 1
      %p118 = por %p116, %p117
      %p120 = scmp.ne.s32.totalorder %s105, %s119
      %p121 = scmp.eq.s32.totalorder %s32, 0
      %p122 = por %p120, %p121
      %s124 = sadd.s32 %s123, 1
      %p127 = scmp.eq.s32.totalorder %s26, 1
      %p128 = scmp.ne.s32.totalorder %s123, %s125
      %p129 = scmp.eq.s32.totalorder %s26, 0
      %p130 = por %p128, %p129
      %p131 = scmp.ne.s32.totalorder %s123, %s125
      %p132 = scmp.eq.s32.totalorder %s31, 1
      %p133 = por %p131, %p132
      %p134 = scmp.ne.s32.totalorder %s125, %s126
      %p135 = scmp.eq.s32.totalorder %s31, 0
      %p136 = por %p134, %p135
      %p137 = scmp.ne.s32.totalorder %s125, %s126
      %p138 = scmp.eq.s32.totalorder %s32, 1
      %p139 = por %p137, %p138
      %p141 = scmp.ne.s32.totalorder %s126, %s140
      %p142 = scmp.eq.s32.totalorder %s32, 0
      %p143 = por %p141, %p142
      %s145 = sadd.s32 %s144, 1
      %p148 = scmp.eq.s32.totalorder %s26, 1
      %p149 = scmp.ne.s32.totalorder %s144, %s146
      %p150 = scmp.eq.s32.totalorder %s26, 0
      %p151 = por %p149, %p150
      %p152 = scmp.ne.s32.totalorder %s144, %s146
      %p153 = scmp.eq.s32.totalorder %s31, 1
      %p154 = por %p152, %p153
      %p155 = scmp.ne.s32.totalorder %s146, %s147
      %p156 = scmp.eq.s32.totalorder %s31, 0
      %p157 = por %p155, %p156
      %p158 = scmp.ne.s32.totalorder %s146, %s147
      %p159 = scmp.eq.s32.totalorder %s32, 1
      %p160 = por %p158, %p159
      %p162 = scmp.ne.s32.totalorder %s147, %s161
      %p163 = scmp.eq.s32.totalorder %s32, 0
      %p164 = por %p162, %p163
      %s166 = sadd.s32 %s165, 1
      %p169 = scmp.eq.s32.totalorder %s26, 1
      %p170 = scmp.ne.s32.totalorder %s165, %s167
      %p171 = scmp.eq.s32.totalorder %s26, 0
      %p172 = por %p170, %p171
      %p173 = scmp.ne.s32.totalorder %s165, %s167
      %p174 = scmp.eq.s32.totalorder %s31, 1
      %p175 = por %p173, %p174
      %p176 = scmp.ne.s32.totalorder %s167, %s168
      %p177 = scmp.eq.s32.totalorder %s31, 0
      %p178 = por %p176, %p177
      %p179 = scmp.ne.s32.totalorder %s167, %s168
      %p180 = scmp.eq.s32.totalorder %s32, 1
      %p181 = por %p179, %p180
      %p183 = scmp.ne.s32.totalorder %s168, %s182
      %p184 = scmp.eq.s32.totalorder %s32, 0
      %p185 = por %p183, %p184
      %s187 = sadd.s32 %s186, 1
      %p190 = scmp.eq.s32.totalorder %s26, 1
      %p191 = scmp.ne.s32.totalorder %s186, %s188
      %p192 = scmp.eq.s32.totalorder %s26, 0
      %p193 = por %p191, %p192
      %p194 = scmp.ne.s32.totalorder %s186, %s188
      %p195 = scmp.eq.s32.totalorder %s31, 1
      %p196 = por %p194, %p195
      %p197 = scmp.ne.s32.totalorder %s188, %s189
      %p198 = scmp.eq.s32.totalorder %s31, 0
      %p199 = por %p197, %p198
      %p200 = scmp.ne.s32.totalorder %s188, %s189
      %p201 = scmp.eq.s32.totalorder %s32, 1
      %p202 = por %p200, %p201
      %p204 = scmp.ne.s32.totalorder %s189, %s203
      %p205 = scmp.eq.s32.totalorder %s32, 0
      %p206 = por %p204, %p205
      %s208 = sadd.s32 %s207, 1
      %p211 = scmp.eq.s32.totalorder %s26, 1
      %p212 = scmp.ne.s32.totalorder %s207, %s209
      %p213 = scmp.eq.s32.totalorder %s26, 0
      %p214 = por %p212, %p213
      %p215 = scmp.ne.s32.totalorder %s207, %s209
      %p216 = scmp.eq.s32.totalorder %s31, 1
      %p217 = por %p215, %p216
      %p218 = scmp.ne.s32.totalorder %s209, %s210
      %p219 = scmp.eq.s32.totalorder %s31, 0
      %p220 = por %p218, %p219
      %p221 = scmp.ne.s32.totalorder %s209, %s210
      %p222 = scmp.eq.s32.totalorder %s32, 1
      %p223 = por %p221, %p222
      %p225 = scmp.ne.s32.totalorder %s210, %s224
      %p226 = scmp.eq.s32.totalorder %s32, 0
      %p227 = por %p225, %p226
      %s229 = sadd.s32 %s228, 1
      %p232 = scmp.eq.s32.totalorder %s26, 1
      %p233 = scmp.ne.s32.totalorder %s228, %s230
      %p234 = scmp.eq.s32.totalorder %s26, 0
      %p235 = por %p233, %p234
      %p236 = scmp.ne.s32.totalorder %s228, %s230
      %p237 = scmp.eq.s32.totalorder %s31, 1
      %p238 = por %p236, %p237
      %p239 = scmp.ne.s32.totalorder %s230, %s231
      %p240 = scmp.eq.s32.totalorder %s31, 0
      %p241 = por %p239, %p240
      %p242 = scmp.ne.s32.totalorder %s230, %s231
      %p243 = scmp.eq.s32.totalorder %s32, 1
      %p244 = por %p242, %p243
      %p246 = scmp.ne.s32.totalorder %s231, %s245
      %p247 = scmp.eq.s32.totalorder %s32, 0
      %p248 = por %p246, %p247
      %s250 = sadd.s32 %s249, 1
      %p253 = scmp.eq.s32.totalorder %s26, 1
      %p254 = scmp.ne.s32.totalorder %s249, %s251
      %p255 = scmp.eq.s32.totalorder %s26, 0
      %p256 = por %p254, %p255
      %p257 = scmp.ne.s32.totalorder %s249, %s251
      %p258 = scmp.eq.s32.totalorder %s31, 1
      %p259 = por %p257, %p258
      %p260 = scmp.ne.s32.totalorder %s251, %s252
      %p261 = scmp.eq.s32.totalorder %s31, 0
      %p262 = por %p260, %p261
      %p263 = scmp.ne.s32.totalorder %s251, %s252
      %p264 = scmp.eq.s32.totalorder %s32, 1
      %p265 = por %p263, %p264
      %p267 = scmp.ne.s32.totalorder %s252, %s266
      %p268 = scmp.eq.s32.totalorder %s32, 0
      %p269 = por %p267, %p268
      %s271 = sadd.s32 %s270, 1
      %p274 = scmp.eq.s32.totalorder %s26, 1
      %p275 = scmp.ne.s32.totalorder %s270, %s272
      %p276 = scmp.eq.s32.totalorder %s26, 0
      %p277 = por %p275, %p276
      %p278 = scmp.ne.s32.totalorder %s270, %s272
      %p279 = scmp.eq.s32.totalorder %s31, 1
      %p280 = por %p278, %p279
      %p281 = scmp.ne.s32.totalorder %s272, %s273
      %p282 = scmp.eq.s32.totalorder %s31, 0
      %p283 = por %p281, %p282
      %p284 = scmp.ne.s32.totalorder %s272, %s273
      %p285 = scmp.eq.s32.totalorder %s32, 1
      %p286 = por %p284, %p285
      %p288 = scmp.ne.s32.totalorder %s273, %s287
      %p289 = scmp.eq.s32.totalorder %s32, 0
      %p290 = por %p288, %p289
      %s292 = sadd.s32 %s291, 1
      %p295 = scmp.eq.s32.totalorder %s26, 1
      %p296 = scmp.ne.s32.totalorder %s291, %s293
      %p297 = scmp.eq.s32.totalorder %s26, 0
      %p298 = por %p296, %p297
      %p299 = scmp.ne.s32.totalorder %s291, %s293
      %p300 = scmp.eq.s32.totalorder %s31, 1
      %p301 = por %p299, %p300
      %p302 = scmp.ne.s32.totalorder %s293, %s294
      %p303 = scmp.eq.s32.totalorder %s31, 0
      %p304 = por %p302, %p303
      %p305 = scmp.ne.s32.totalorder %s293, %s294
      %p306 = scmp.eq.s32.totalorder %s32, 1
      %p307 = por %p305, %p306
      %p309 = scmp.ne.s32.totalorder %s294, %s308
      %p310 = scmp.eq.s32.totalorder %s32, 0
      %p311 = por %p309, %p310
      %s313 = sadd.s32 %s312, 1
      %p316 = scmp.eq.s32.totalorder %s26, 1
      %p317 = scmp.ne.s32.totalorder %s312, %s314
      %p318 = scmp.eq.s32.totalorder %s26, 0
      %p319 = por %p317, %p318
      %p320 = scmp.ne.s32.totalorder %s312, %s314
      %p321 = scmp.eq.s32.totalorder %s31, 1
      %p322 = por %p320, %p321
      %p323 = scmp.ne.s32.totalorder %s314, %s315
      %p324 = scmp.eq.s32.totalorder %s31, 0
      %p325 = por %p323, %p324
      %p326 = scmp.ne.s32.totalorder %s314, %s315
      %p327 = scmp.eq.s32.totalorder %s32, 1
      %p328 = por %p326, %p327
      %p330 = scmp.ne.s32.totalorder %s315, %s329
      %p331 = scmp.eq.s32.totalorder %s32, 0
      %p332 = por %p330, %p331
      %s334 = sadd.s32 %s333, 1
      %p337 = scmp.eq.s32.totalorder %s26, 1
      %p338 = scmp.ne.s32.totalorder %s333, %s335
      %p339 = scmp.eq.s32.totalorder %s26, 0
      %p340 = por %p338, %p339
      %p341 = scmp.ne.s32.totalorder %s333, %s335
      %p342 = scmp.eq.s32.totalorder %s31, 1
      %p343 = por %p341, %p342
      %p344 = scmp.ne.s32.totalorder %s335, %s336
      %p345 = scmp.eq.s32.totalorder %s31, 0
      %p346 = por %p344, %p345
      %p347 = scmp.ne.s32.totalorder %s335, %s336
      %p348 = scmp.eq.s32.totalorder %s32, 1
      %p349 = por %p347, %p348
      %p351 = scmp.ne.s32.totalorder %s336, %s350
      %p352 = scmp.eq.s32.totalorder %s32, 0
      %p353 = por %p351, %p352
      %s355 = sadd.s32 %s354, 1
      %p358 = scmp.eq.s32.totalorder %s26, 1
      %p359 = scmp.ne.s32.totalorder %s354, %s356
      %p360 = scmp.eq.s32.totalorder %s26, 0
      %p361 = por %p359, %p360
      %p362 = scmp.ne.s32.totalorder %s354, %s356
      %p363 = scmp.eq.s32.totalorder %s31, 1
      %p364 = por %p362, %p363
      %p365 = scmp.ne.s32.totalorder %s356, %s357
      %p366 = scmp.eq.s32.totalorder %s31, 0
      %p367 = por %p365, %p366
      %p368 = scmp.ne.s32.totalorder %s356, %s357
      %p369 = scmp.eq.s32.totalorder %s32, 1
      %p370 = por %p368, %p369
      %p372 = scmp.ne.s32.totalorder %s357, %s371
      %p373 = scmp.eq.s32.totalorder %s32, 0
      %p374 = por %p372, %p373
      %s376 = sadd.s32 %s375, 1
      %p379 = scmp.eq.s32.totalorder %s26, 1
      %p380 = scmp.ne.s32.totalorder %s375, %s377
      %p381 = scmp.eq.s32.totalorder %s26, 0
      %p382 = por %p380, %p381
      %p383 = scmp.ne.s32.totalorder %s375, %s377
      %p384 = scmp.eq.s32.totalorder %s31, 1
      %p385 = por %p383, %p384
      %p386 = scmp.ne.s32.totalorder %s377, %s378
      %p387 = scmp.eq.s32.totalorder %s31, 0
      %p388 = por %p386, %p387
      %p389 = scmp.ne.s32.totalorder %s377, %s378
      %p390 = scmp.eq.s32.totalorder %s32, 1
      %p391 = por %p389, %p390
      %p393 = scmp.ne.s32.totalorder %s378, %s392
      %p394 = scmp.eq.s32.totalorder %s32, 0
      %p395 = por %p393, %p394
      %s396 = ssub.s32 %s26, %s33
      %p397 = scmp.eq.s32.totalorder %s396, 0
      %s399 = sadd.s32 %s398, 1
      %s400 = scalar_select %p397, %s398, %s399
      %p403 = pneg %p397
      %p404 = scmp.eq.s32.totalorder %s26, 1
      %p405 = por %p403, %p404
      %p406 = scmp.ne.s32.totalorder %s398, %s401
      %p407 = scmp.eq.s32.totalorder %s26, 0
      %p408 = por %p406, %p407
      %p409 = scmp.ne.s32.totalorder %s398, %s401
      %p410 = scmp.eq.s32.totalorder %s31, 1
      %p411 = por %p409, %p410
      %p412 = scmp.ne.s32.totalorder %s401, %s402
      %p413 = scmp.eq.s32.totalorder %s31, 0
      %p414 = por %p412, %p413
      %p415 = scmp.ne.s32.totalorder %s401, %s402
      %p416 = scmp.eq.s32.totalorder %s32, 1
      %p417 = por %p415, %p416
      %p419 = scmp.ne.s32.totalorder %s402, %s418
      %p420 = scmp.eq.s32.totalorder %s32, 0
      %p421 = por %p419, %p420
      %p422 = scmp.le.s32.totalorder 1, %s26
      %p423 = scmp.lt.s32.totalorder %s26, 3
      %p424 = pnand %p422, %p423
      %p425 = pneg %p424
      // Predicated region
      $region9: #{tpu_custom_call.1} parent=5 // pred_check
        _
      $region10: #{tpu_custom_call.1} parent=5 // pred_check_branch
        %427 = sbr.rel (%p424) target = $region12
      $region11: #{tpu_custom_call.1} parent=5 // pred_region
        %s428 = ssub.s32 %s26, 1
        // Predicated region
        $region13: #{tpu_custom_call.1} parent=11 // pred_check
          %p429 = pneg %p73
        $region14: #{tpu_custom_call.1} parent=11 // pred_check_branch
          %431 = sbr.rel (%p429) target = $region16
        $region15: #{tpu_custom_call.1} parent=11 // pred_region
          _
        $region16: #{tpu_custom_call.1} parent=11 // pred_fallthru
          _
        // Predicated region
        $region17: #{tpu_custom_call.1} parent=11 // pred_check
          %p432 = pneg %p94
        $region18: #{tpu_custom_call.1} parent=11 // pred_check_branch
          %434 = sbr.rel (%p432) target = $region20
        $region19: #{tpu_custom_call.1} parent=11 // pred_region
          _
        $region20: #{tpu_custom_call.1} parent=11 // pred_fallthru
          _
        // Predicated region
        $region21: #{tpu_custom_call.1} parent=11 // pred_check
          %p435 = pneg %p115
        $region22: #{tpu_custom_call.1} parent=11 // pred_check_branch
          %437 = sbr.rel (%p435) target = $region24
        $region23: #{tpu_custom_call.1} parent=11 // pred_region
          _
        $region24: #{tpu_custom_call.1} parent=11 // pred_fallthru
          _
        // Predicated region
        $region25: #{tpu_custom_call.1} parent=11 // pred_check
          %p438 = pneg %p136
        $region26: #{tpu_custom_call.1} parent=11 // pred_check_branch
          %440 = sbr.rel (%p438) target = $region28
        $region27: #{tpu_custom_call.1} parent=11 // pred_region
          _
        $region28: #{tpu_custom_call.1} parent=11 // pred_fallthru
          _
        // Predicated region
        $region29: #{tpu_custom_call.1} parent=11 // pred_check
          %p441 = pneg %p157
        $region30: #{tpu_custom_call.1} parent=11 // pred_check_branch
          %443 = sbr.rel (%p441) target = $region32
        $region31: #{tpu_custom_call.1} parent=11 // pred_region
          _
        $region32: #{tpu_custom_call.1} parent=11 // pred_fallthru
          _
        // Predicated region
        $region33: #{tpu_custom_call.1} parent=11 // pred_check
          %p444 = pneg %p178
        $region34: #{tpu_custom_call.1} parent=11 // pred_check_branch
          %446 = sbr.rel (%p444) target = $region36
        $region35: #{tpu_custom_call.1} parent=11 // pred_region
          _
        $region36: #{tpu_custom_call.1} parent=11 // pred_fallthru
          _
        // Predicated region
        $region37: #{tpu_custom_call.1} parent=11 // pred_check
          %p447 = pneg %p199
        $region38: #{tpu_custom_call.1} parent=11 // pred_check_branch
          %449 = sbr.rel (%p447) target = $region40
        $region39: #{tpu_custom_call.1} parent=11 // pred_region
          _
        $region40: #{tpu_custom_call.1} parent=11 // pred_fallthru
          _
        // Predicated region
        $region41: #{tpu_custom_call.1} parent=11 // pred_check
          %p450 = pneg %p220
        $region42: #{tpu_custom_call.1} parent=11 // pred_check_branch
          %452 = sbr.rel (%p450) target = $region44
        $region43: #{tpu_custom_call.1} parent=11 // pred_region
          _
        $region44: #{tpu_custom_call.1} parent=11 // pred_fallthru
          _
        // Predicated region
        $region45: #{tpu_custom_call.1} parent=11 // pred_check
          %p453 = pneg %p241
        $region46: #{tpu_custom_call.1} parent=11 // pred_check_branch
          %455 = sbr.rel (%p453) target = $region48
        $region47: #{tpu_custom_call.1} parent=11 // pred_region
          _
        $region48: #{tpu_custom_call.1} parent=11 // pred_fallthru
          _
        // Predicated region
        $region49: #{tpu_custom_call.1} parent=11 // pred_check
          %p456 = pneg %p262
        $region50: #{tpu_custom_call.1} parent=11 // pred_check_branch
          %458 = sbr.rel (%p456) target = $region52
        $region51: #{tpu_custom_call.1} parent=11 // pred_region
          _
        $region52: #{tpu_custom_call.1} parent=11 // pred_fallthru
          _
        // Predicated region
        $region53: #{tpu_custom_call.1} parent=11 // pred_check
          %p459 = pneg %p283
        $region54: #{tpu_custom_call.1} parent=11 // pred_check_branch
          %461 = sbr.rel (%p459) target = $region56
        $region55: #{tpu_custom_call.1} parent=11 // pred_region
          _
        $region56: #{tpu_custom_call.1} parent=11 // pred_fallthru
          _
        // Predicated region
        $region57: #{tpu_custom_call.1} parent=11 // pred_check
          %p462 = pneg %p304
        $region58: #{tpu_custom_call.1} parent=11 // pred_check_branch
          %464 = sbr.rel (%p462) target = $region60
        $region59: #{tpu_custom_call.1} parent=11 // pred_region
          _
        $region60: #{tpu_custom_call.1} parent=11 // pred_fallthru
          _
        // Predicated region
        $region61: #{tpu_custom_call.1} parent=11 // pred_check
          %p465 = pneg %p325
        $region62: #{tpu_custom_call.1} parent=11 // pred_check_branch
          %467 = sbr.rel (%p465) target = $region64
        $region63: #{tpu_custom_call.1} parent=11 // pred_region
          _
        $region64: #{tpu_custom_call.1} parent=11 // pred_fallthru
          _
        // Predicated region
        $region65: #{tpu_custom_call.1} parent=11 // pred_check
          %p468 = pneg %p346
        $region66: #{tpu_custom_call.1} parent=11 // pred_check_branch
          %470 = sbr.rel (%p468) target = $region68
        $region67: #{tpu_custom_call.1} parent=11 // pred_region
          _
        $region68: #{tpu_custom_call.1} parent=11 // pred_fallthru
          _
        // Predicated region
        $region69: #{tpu_custom_call.1} parent=11 // pred_check
          %p471 = pneg %p367
        $region70: #{tpu_custom_call.1} parent=11 // pred_check_branch
          %473 = sbr.rel (%p471) target = $region72
        $region71: #{tpu_custom_call.1} parent=11 // pred_region
          _
        $region72: #{tpu_custom_call.1} parent=11 // pred_fallthru
          _
        // Predicated region
        $region73: #{tpu_custom_call.1} parent=11 // pred_check
          %p474 = pneg %p388
        $region74: #{tpu_custom_call.1} parent=11 // pred_check_branch
          %476 = sbr.rel (%p474) target = $region76
        $region75: #{tpu_custom_call.1} parent=11 // pred_region
          _
        $region76: #{tpu_custom_call.1} parent=11 // pred_fallthru
          _
      $region12: #{tpu_custom_call.1} parent=5 // pred_fallthru
        _
      %p477 = scmp.lt.s32.totalorder %s26, 2
      // Predicated region
      $region77: #{tpu_custom_call.1} parent=5 // pred_check
        %p478 = pneg %p477
      $region78: #{tpu_custom_call.1} parent=5 // pred_check_branch
        %480 = sbr.rel (%p478) target = $region80
      $region79: #{tpu_custom_call.1} parent=5 // pred_region
        // Predicated region
        $region81: #{tpu_custom_call.1} parent=79 // pred_check
          %p481 = pneg %p46
        $region82: #{tpu_custom_call.1} parent=79 // pred_check_branch
          %483 = sbr.rel (%p481) target = $region84
        $region83: #{tpu_custom_call.1} parent=79 // pred_region
          %p484 = scmp.lt.s32.totalorder %s26, 1
          %s485 = scalar_select %p484, %s26, 1
          %s486 = smul.addr %s485, 8
          %s487 = scalar_lea.vmem %s0, %s486
        $region84: #{tpu_custom_call.1} parent=79 // pred_fallthru
          _
      $region80: #{tpu_custom_call.1} parent=5 // pred_fallthru
        _
      %p488 = scmp.le.s32.totalorder 1, %s26
      %p489 = scmp.lt.s32.totalorder %s26, 3
      %p490 = pnand %p488, %p489
      %p491 = pneg %p490
      // Predicated region
      $region85: #{tpu_custom_call.1} parent=5 // pred_check
        _
      $region86: #{tpu_custom_call.1} parent=5 // pred_check_branch
        %493 = sbr.rel (%p490) target = $region88
      $region87: #{tpu_custom_call.1} parent=5 // pred_region
        %s494 = ssub.s32 %s26, 1
        %p495 = scmp.lt.s32.totalorder %s31, 1
        %s496 = scalar_select %p495, %s31, 1
        %s497 = smul.addr %s496, 8
        %s498 = scalar_lea.vmem %s0, %s497
        %p499 = pneg %p52
        %p500 = pneg %p49
        %p501 = pneg %p73
        %p502 = pneg %p70
        %p503 = pneg %p94
        %p504 = pneg %p91
        %p505 = pneg %p115
        %p506 = pneg %p112
        %p507 = pneg %p136
        %p508 = pneg %p133
        %p509 = pneg %p157
        %p510 = pneg %p154
        %p511 = pneg %p178
        %p512 = pneg %p175
        %p513 = pneg %p199
        %p514 = pneg %p196
        %p515 = pneg %p220
        %p516 = pneg %p217
        %p517 = pneg %p241
        %p518 = pneg %p238
        %p519 = pneg %p262
        %p520 = pneg %p259
        %p521 = pneg %p283
        %p522 = pneg %p280
        %p523 = pneg %p304
        %p524 = pneg %p301
        %p525 = pneg %p325
        %p526 = pneg %p322
        %p527 = pneg %p346
        %p528 = pneg %p343
        %p529 = pneg %p367
        %p530 = pneg %p364
        %p531 = pneg %p388
        %p532 = pneg %p385
        %p533 = pneg %p414
        %p534 = pneg %p411
        %s535 = sand.u32 %s401, 1
        %s536 = scalar_lea.sflag [#allocation3], %s535
        %s537 = sand.u32 %s401, 1
        %s538 = smul.addr %s537, 8
        %s539 = scalar_lea.vmem [#allocation2], %s538
        %p540 = scmp.lt.s32.totalorder %s31, 1
        %s541 = scalar_select %p540, %s31, 1
        %s542 = smul.addr %s541, 8
        %s543 = scalar_lea.vmem %s0, %s542
        %v544 = vld [vmem:[%s543] sm:$0xff]
        %v545 = vld [vmem:[%s1] sm:$0x1]
        %v546 = vld [vmem:[%s2] sm:$0x1]
        %vm547 = vcmask 261120
        %v548 = vsel %vm547, %v544, 0.0
        %549 = vadd.xlane.f32.xlu0 %v548
        %v550 = vpop.xlane.xlu0 %549
        %v551 = vrcp.pop 32.0
        %v552 = vmul.f32 %v550, %v551
        %v553 = vsub.f32 %v544, %v552
        %v554 = vmul.f32 %v553, %v553
        %v555 = vsel %vm547, %v554, 0.0
        %556 = vadd.xlane.f32.xlu0 %v555
        %v557 = vpop.xlane.xlu0 %556
        %v558 = vmul.f32 %v557, %v551
        %v559 = vadd.f32 %v558, 1e-05
        %v560 = vrsqrt.pop %v559
        %v561 = vmul.f32 %v553, %v560
        %v563 = vlaneseq
        %v564 = vshrl.u32 %v563, 7
        %v565 = vsub.s32 0, %v564
        %v566 = vrot.slane %v545, %v565
        %v568 = vmul.f32 %v561, %v566
        %v570 = vlaneseq
        %v571 = vshrl.u32 %v570, 7
        %v572 = vsub.s32 0, %v571
        %v573 = vrot.slane %v546, %v572
        %v575 = vadd.f32 %v568, %v573
        %v576 = vld [vmem:[%s3] sm:$0xff]
        %v577 = vld [vmem:[%s3 + $0x8] sm:$0xff]
        %v578 = vld [vmem:[%s3 + $0x10] sm:$0xff]
        %v579 = vld [vmem:[%s3 + $0x18] sm:$0xff]
        %v580 = vld [vmem:[%s3 + $0x20] sm:$0xff]
        %v581 = vld [vmem:[%s3 + $0x28] sm:$0xff]
        %v582 = vld [vmem:[%s3 + $0x30] sm:$0xff]
        %v583 = vld [vmem:[%s3 + $0x38] sm:$0xff]
        %v584 = vld [vmem:[%s3 + $0x40] sm:$0xff]
        %v585 = vld [vmem:[%s3 + $0x48] sm:$0xff]
        %v586 = vld [vmem:[%s3 + $0x50] sm:$0xff]
        %v587 = vld [vmem:[%s3 + $0x58] sm:$0xff]
        %v588 = vld [vmem:[%s3 + $0x60] sm:$0xff]
        %v589 = vld [vmem:[%s3 + $0x68] sm:$0xff]
        %v590 = vld [vmem:[%s3 + $0x70] sm:$0xff]
        %v591 = vld [vmem:[%s3 + $0x78] sm:$0xff]
        %v592 = vld [vmem:[%s4] sm:$0x1]
        %v593 = vld [vmem:[%s4 + $0x1] sm:$0x1]
        %v594 = vld [vmem:[%s4 + $0x2] sm:$0x1]
        %v595 = vld [vmem:[%s4 + $0x3] sm:$0x1]
        %v600 = vlaneseq
        %v601 = vshrl.u32 %v600, 7
        %v602 = vsub.s32 0, %v601
        %v603 = vrot.slane %v592, %v602
        %v604 = vlaneseq
        %v605 = vshrl.u32 %v604, 7
        %v606 = vsub.s32 0, %v605
        %v607 = vrot.slane %v593, %v606
        %v608 = vlaneseq
        %v609 = vshrl.u32 %v608, 7
        %v610 = vsub.s32 0, %v609
        %v611 = vrot.slane %v594, %v610
        %v612 = vlaneseq
        %v613 = vshrl.u32 %v612, 7
        %v614 = vsub.s32 0, %v613
        %v615 = vrot.slane %v595, %v614
        %v621 = vsel %vm547, %v575, 0
        %623 = vmatprep.subr.mxu0 0.0
        %624 = vmatpush1.msra.mxu0 %v576
        %625 = vmatprep.subr.mxu0 0.0
        %626 = vmatpush1.msra.mxu0 %v577
        %627 = vmatprep.subr.mxu0 0.0
        %628 = vmatpush1.msra.mxu0 %v578
        %629 = vmatprep.subr.mxu0 0.0
        %630 = vmatpush1.msra.mxu0 %v579
        %631 = vmatprep.subr.mxu0 0.0
        %632 = vmatpush1.msra.mxu0 0.0
        %633 = vmatprep.subr.mxu0 0.0
        %634 = vmatpush1.msra.mxu0 0.0
        %635 = vmatprep.subr.mxu0 0.0
        %636 = vmatpush1.msra.mxu0 0.0
        %637 = vmatprep.subr.mxu0 0.0
        %638 = vmatpush1.msra.mxu0 0.0
        %639 = vmatprep.subr.mxu0 0.0
        %640 = vmatpush1.msra.mxu0 0.0
        %641 = vmatprep.subr.mxu0 0.0
        %642 = vmatpush1.msra.mxu0 0.0
        %643 = vmatprep.subr.mxu0 0.0
        %644 = vmatpush1.msra.mxu0 0.0
        %645 = vmatprep.subr.mxu0 0.0
        %646 = vmatpush1.msra.mxu0 0.0
        %647 = vmatprep.subr.mxu0 0.0
        %648 = vmatpush1.msra.mxu0 0.0
        %649 = vmatprep.subr.mxu0 0.0
        %650 = vmatpush1.msra.mxu0 0.0
        %651 = vmatprep.subr.mxu0 0.0
        %652 = vmatpush1.msra.mxu0 0.0
        %653 = vmatprep.subr.mxu0 0.0
        %654 = vmatpush1.msra.mxu0 0.0
        %655 = vmatprep.subr.mxu0 0.0
        %656 = vmatpush1.msra.mxu0 0.0
        %657 = vmatprep.subr.mxu0 0.0
        %658 = vmatpush1.msra.mxu0 0.0
        %659 = vmatprep.subr.mxu0 0.0
        %660 = vmatpush1.msra.mxu0 0.0
        %661 = vmatprep.subr.mxu0 0.0
        %662 = vmatpush1.msra.mxu0 0.0
        %663 = vmatprep.subr.mxu0 0.0
        %664 = vmatpush1.msra.mxu0 0.0
        %665 = vmatprep.subr.mxu0 0.0
        %666 = vmatpush1.msra.mxu0 0.0
        %667 = vmatprep.subr.mxu0 0.0
        %668 = vmatpush1.msra.mxu0 0.0
        %669 = vmatprep.subr.mxu0 0.0
        %670 = vmatpush1.msra.mxu0 0.0
        %671 = vmatprep.subr.mxu0 0.0
        %672 = vmatpush1.msra.mxu0 0.0
        %673 = vmatprep.subr.mxu0 0.0
        %674 = vmatpush1.msra.mxu0 0.0
        %675 = vmatprep.subr.mxu0 0.0
        %676 = vmatpush1.msra.mxu0 0.0
        %677 = vmatprep.subr.mxu0 0.0
        %678 = vmatpush1.msra.mxu0 0.0
        %679 = vmatprep.subr.mxu0 0.0
        %680 = vmatpush1.msra.mxu0 0.0
        %681 = vmatprep.subr.mxu0 0.0
        %682 = vmatpush1.msra.mxu0 0.0
        %683 = vmatprep.subr.mxu0 0.0
        %684 = vmatpush1.msra.mxu0 0.0
        %685 = vmatprep.subr.mxu0 0.0
        %686 = vmatpush1.msra.mxu0 0.0
        %687 = vmatprep.mubr.f32.mxu0 0.0
        %688 = vmatmul.mubr.f32.gmra.mrb[0].mxu0 %v621
        %v689 = vpop.f32.mrb[0].mxu0
        %v690 = vadd.f32 %v603, %v689
        %v691 = vpop.f32.mrb[0].mxu0
        %692 = vdwg.mxu0
        %693 = vmatprep.subr.mxu0 0.0
        %694 = vmatpush1.msra.mxu0 %v580
        %695 = vmatprep.subr.mxu0 0.0
        %696 = vmatpush1.msra.mxu0 %v581
        %697 = vmatprep.subr.mxu0 0.0
        %698 = vmatpush1.msra.mxu0 %v582
        %699 = vmatprep.subr.mxu0 0.0
        %700 = vmatpush1.msra.mxu0 %v583
        %701 = vmatprep.subr.mxu0 0.0
        %702 = vmatpush1.msra.mxu0 0.0
        %703 = vmatprep.subr.mxu0 0.0
        %704 = vmatpush1.msra.mxu0 0.0
        %705 = vmatprep.subr.mxu0 0.0
        %706 = vmatpush1.msra.mxu0 0.0
        %707 = vmatprep.subr.mxu0 0.0
        %708 = vmatpush1.msra.mxu0 0.0
        %709 = vmatprep.subr.mxu0 0.0
        %710 = vmatpush1.msra.mxu0 0.0
        %711 = vmatprep.subr.mxu0 0.0
        %712 = vmatpush1.msra.mxu0 0.0
        %713 = vmatprep.subr.mxu0 0.0
        %714 = vmatpush1.msra.mxu0 0.0
        %715 = vmatprep.subr.mxu0 0.0
        %716 = vmatpush1.msra.mxu0 0.0
        %717 = vmatprep.subr.mxu0 0.0
        %718 = vmatpush1.msra.mxu0 0.0
        %719 = vmatprep.subr.mxu0 0.0
        %720 = vmatpush1.msra.mxu0 0.0
        %721 = vmatprep.subr.mxu0 0.0
        %722 = vmatpush1.msra.mxu0 0.0
        %723 = vmatprep.subr.mxu0 0.0
        %724 = vmatpush1.msra.mxu0 0.0
        %725 = vmatprep.subr.mxu0 0.0
        %726 = vmatpush1.msra.mxu0 0.0
        %727 = vmatprep.subr.mxu0 0.0
        %728 = vmatpush1.msra.mxu0 0.0
        %729 = vmatprep.subr.mxu0 0.0
        %730 = vmatpush1.msra.mxu0 0.0
        %731 = vmatprep.subr.mxu0 0.0
        %732 = vmatpush1.msra.mxu0 0.0
        %733 = vmatprep.subr.mxu0 0.0
        %734 = vmatpush1.msra.mxu0 0.0
        %735 = vmatprep.subr.mxu0 0.0
        %736 = vmatpush1.msra.mxu0 0.0
        %737 = vmatprep.subr.mxu0 0.0
        %738 = vmatpush1.msra.mxu0 0.0
        %739 = vmatprep.subr.mxu0 0.0
        %740 = vmatpush1.msra.mxu0 0.0
        %741 = vmatprep.subr.mxu0 0.0
        %742 = vmatpush1.msra.mxu0 0.0
        %743 = vmatprep.subr.mxu0 0.0
        %744 = vmatpush1.msra.mxu0 0.0
        %745 = vmatprep.subr.mxu0 0.0
        %746 = vmatpush1.msra.mxu0 0.0
        %747 = vmatprep.subr.mxu0 0.0
        %748 = vmatpush1.msra.mxu0 0.0
        %749 = vmatprep.subr.mxu0 0.0
        %750 = vmatpush1.msra.mxu0 0.0
        %751 = vmatprep.subr.mxu0 0.0
        %752 = vmatpush1.msra.mxu0 0.0
        %753 = vmatprep.subr.mxu0 0.0
        %754 = vmatpush1.msra.mxu0 0.0
        %755 = vmatprep.subr.mxu0 0.0
        %756 = vmatpush1.msra.mxu0 0.0
        %757 = vmatprep.mubr.f32.mxu0 0.0
        %758 = vmatmul.mubr.f32.gmra.mrb[0].mxu0 %v621
        %v759 = vpop.f32.mrb[0].mxu0
        %v760 = vadd.f32 %v607, %v759
        %v761 = vpop.f32.mrb[0].mxu0
        %762 = vdwg.mxu0
        %763 = vmatprep.subr.mxu0 0.0
        %764 = vmatpush1.msra.mxu0 %v584
        %765 = vmatprep.subr.mxu0 0.0
        %766 = vmatpush1.msra.mxu0 %v585
        %767 = vmatprep.subr.mxu0 0.0
        %768 = vmatpush1.msra.mxu0 %v586
        %769 = vmatprep.subr.mxu0 0.0
        %770 = vmatpush1.msra.mxu0 %v587
        %771 = vmatprep.subr.mxu0 0.0
        %772 = vmatpush1.msra.mxu0 0.0
        %773 = vmatprep.subr.mxu0 0.0
        %774 = vmatpush1.msra.mxu0 0.0
        %775 = vmatprep.subr.mxu0 0.0
        %776 = vmatpush1.msra.mxu0 0.0
        %777 = vmatprep.subr.mxu0 0.0
        %778 = vmatpush1.msra.mxu0 0.0
        %779 = vmatprep.subr.mxu0 0.0
        %780 = vmatpush1.msra.mxu0 0.0
        %781 = vmatprep.subr.mxu0 0.0
        %782 = vmatpush1.msra.mxu0 0.0
        %783 = vmatprep.subr.mxu0 0.0
        %784 = vmatpush1.msra.mxu0 0.0
        %785 = vmatprep.subr.mxu0 0.0
        %786 = vmatpush1.msra.mxu0 0.0
        %787 = vmatprep.subr.mxu0 0.0
        %788 = vmatpush1.msra.mxu0 0.0
        %789 = vmatprep.subr.mxu0 0.0
        %790 = vmatpush1.msra.mxu0 0.0
        %791 = vmatprep.subr.mxu0 0.0
        %792 = vmatpush1.msra.mxu0 0.0
        %793 = vmatprep.subr.mxu0 0.0
        %794 = vmatpush1.msra.mxu0 0.0
        %795 = vmatprep.subr.mxu0 0.0
        %796 = vmatpush1.msra.mxu0 0.0
        %797 = vmatprep.subr.mxu0 0.0
        %798 = vmatpush1.msra.mxu0 0.0
        %799 = vmatprep.subr.mxu0 0.0
        %800 = vmatpush1.msra.mxu0 0.0
        %801 = vmatprep.subr.mxu0 0.0
        %802 = vmatpush1.msra.mxu0 0.0
        %803 = vmatprep.subr.mxu0 0.0
        %804 = vmatpush1.msra.mxu0 0.0
        %805 = vmatprep.subr.mxu0 0.0
        %806 = vmatpush1.msra.mxu0 0.0
        %807 = vmatprep.subr.mxu0 0.0
        %808 = vmatpush1.msra.mxu0 0.0
        %809 = vmatprep.subr.mxu0 0.0
        %810 = vmatpush1.msra.mxu0 0.0
        %811 = vmatprep.subr.mxu0 0.0
        %812 = vmatpush1.msra.mxu0 0.0
        %813 = vmatprep.subr.mxu0 0.0
        %814 = vmatpush1.msra.mxu0 0.0
        %815 = vmatprep.subr.mxu0 0.0
        %816 = vmatpush1.msra.mxu0 0.0
        %817 = vmatprep.subr.mxu0 0.0
        %818 = vmatpush1.msra.mxu0 0.0
        %819 = vmatprep.subr.mxu0 0.0
        %820 = vmatpush1.msra.mxu0 0.0
        %821 = vmatprep.subr.mxu0 0.0
        %822 = vmatpush1.msra.mxu0 0.0
        %823 = vmatprep.subr.mxu0 0.0
        %824 = vmatpush1.msra.mxu0 0.0
        %825 = vmatprep.subr.mxu0 0.0
        %826 = vmatpush1.msra.mxu0 0.0
        %827 = vmatprep.mubr.f32.mxu0 0.0
        %828 = vmatmul.mubr.f32.gmra.mrb[0].mxu0 %v621
        %v829 = vpop.f32.mrb[0].mxu0
        %v830 = vadd.f32 %v611, %v829
        %v831 = vpop.f32.mrb[0].mxu0
        %832 = vdwg.mxu0
        %833 = vmatprep.subr.mxu0 0.0
        %834 = vmatpush1.msra.mxu0 %v588
        %835 = vmatprep.subr.mxu0 0.0
        %836 = vmatpush1.msra.mxu0 %v589
        %837 = vmatprep.subr.mxu0 0.0
        %838 = vmatpush1.msra.mxu0 %v590
        %839 = vmatprep.subr.mxu0 0.0
        %840 = vmatpush1.msra.mxu0 %v591
        %841 = vmatprep.subr.mxu0 0.0
        %842 = vmatpush1.msra.mxu0 0.0
        %843 = vmatprep.subr.mxu0 0.0
        %844 = vmatpush1.msra.mxu0 0.0
        %845 = vmatprep.subr.mxu0 0.0
        %846 = vmatpush1.msra.mxu0 0.0
        %847 = vmatprep.subr.mxu0 0.0
        %848 = vmatpush1.msra.mxu0 0.0
        %849 = vmatprep.subr.mxu0 0.0
        %850 = vmatpush1.msra.mxu0 0.0
        %851 = vmatprep.subr.mxu0 0.0
        %852 = vmatpush1.msra.mxu0 0.0
        %853 = vmatprep.subr.mxu0 0.0
        %854 = vmatpush1.msra.mxu0 0.0
        %855 = vmatprep.subr.mxu0 0.0
        %856 = vmatpush1.msra.mxu0 0.0
        %857 = vmatprep.subr.mxu0 0.0
        %858 = vmatpush1.msra.mxu0 0.0
        %859 = vmatprep.subr.mxu0 0.0
        %860 = vmatpush1.msra.mxu0 0.0
        %861 = vmatprep.subr.mxu0 0.0
        %862 = vmatpush1.msra.mxu0 0.0
        %863 = vmatprep.subr.mxu0 0.0
        %864 = vmatpush1.msra.mxu0 0.0
        %865 = vmatprep.subr.mxu0 0.0
        %866 = vmatpush1.msra.mxu0 0.0
        %867 = vmatprep.subr.mxu0 0.0
        %868 = vmatpush1.msra.mxu0 0.0
        %869 = vmatprep.subr.mxu0 0.0
        %870 = vmatpush1.msra.mxu0 0.0
        %871 = vmatprep.subr.mxu0 0.0
        %872 = vmatpush1.msra.mxu0 0.0
        %873 = vmatprep.subr.mxu0 0.0
        %874 = vmatpush1.msra.mxu0 0.0
        %875 = vmatprep.subr.mxu0 0.0
        %876 = vmatpush1.msra.mxu0 0.0
        %877 = vmatprep.subr.mxu0 0.0
        %878 = vmatpush1.msra.mxu0 0.0
        %879 = vmatprep.subr.mxu0 0.0
        %880 = vmatpush1.msra.mxu0 0.0
        %881 = vmatprep.subr.mxu0 0.0
        %882 = vmatpush1.msra.mxu0 0.0
        %883 = vmatprep.subr.mxu0 0.0
        %884 = vmatpush1.msra.mxu0 0.0
        %885 = vmatprep.subr.mxu0 0.0
        %886 = vmatpush1.msra.mxu0 0.0
        %887 = vmatprep.subr.mxu0 0.0
        %888 = vmatpush1.msra.mxu0 0.0
        %889 = vmatprep.subr.mxu0 0.0
        %890 = vmatpush1.msra.mxu0 0.0
        %891 = vmatprep.subr.mxu0 0.0
        %892 = vmatpush1.msra.mxu0 0.0
        %893 = vmatprep.subr.mxu0 0.0
        %894 = vmatpush1.msra.mxu0 0.0
        %895 = vmatprep.subr.mxu0 0.0
        %896 = vmatpush1.msra.mxu0 0.0
        %897 = vmatprep.mubr.f32.mxu0 0.0
        %898 = vmatmul.mubr.f32.gmra.mrb[0].mxu0 %v621
        %v899 = vpop.f32.mrb[0].mxu0
        %v900 = vadd.f32 %v615, %v899
        %v901 = vpop.f32.mrb[0].mxu0
        %902 = vdwg.mxu0
        %v903 = vld [vmem:[%s5] sm:$0xff]
        %v904 = vld [vmem:[%s5 + $0x8] sm:$0xff]
        %v905 = vld [vmem:[%s5 + $0x10] sm:$0xff]
        %v906 = vld [vmem:[%s5 + $0x18] sm:$0xff]
        %v907 = vld [vmem:[%s5 + $0x20] sm:$0xff]
        %v908 = vld [vmem:[%s5 + $0x28] sm:$0xff]
        %v909 = vld [vmem:[%s5 + $0x30] sm:$0xff]
        %v910 = vld [vmem:[%s5 + $0x38] sm:$0xff]
        %v911 = vld [vmem:[%s5 + $0x40] sm:$0xff]
        %v912 = vld [vmem:[%s5 + $0x48] sm:$0xff]
        %v913 = vld [vmem:[%s5 + $0x50] sm:$0xff]
        %v914 = vld [vmem:[%s5 + $0x58] sm:$0xff]
        %v915 = vld [vmem:[%s5 + $0x60] sm:$0xff]
        %v916 = vld [vmem:[%s5 + $0x68] sm:$0xff]
        %v917 = vld [vmem:[%s5 + $0x70] sm:$0xff]
        %v918 = vld [vmem:[%s5 + $0x78] sm:$0xff]
        %v919 = vld [vmem:[%s6] sm:$0x1]
        %v920 = vld [vmem:[%s6 + $0x1] sm:$0x1]
        %v921 = vld [vmem:[%s6 + $0x2] sm:$0x1]
        %v922 = vld [vmem:[%s6 + $0x3] sm:$0x1]
        %v927 = vlaneseq
        %v928 = vshrl.u32 %v927, 7
        %v929 = vsub.s32 0, %v928
        %v930 = vrot.slane %v919, %v929
        %v931 = vlaneseq
        %v932 = vshrl.u32 %v931, 7
        %v933 = vsub.s32 0, %v932
        %v934 = vrot.slane %v920, %v933
        %v935 = vlaneseq
        %v936 = vshrl.u32 %v935, 7
        %v937 = vsub.s32 0, %v936
        %v938 = vrot.slane %v921, %v937
        %v939 = vlaneseq
        %v940 = vshrl.u32 %v939, 7
        %v941 = vsub.s32 0, %v940
        %v942 = vrot.slane %v922, %v941
        %947 = vmatprep.subr.mxu0 0.0
        %948 = vmatpush1.msra.mxu0 %v903
        %949 = vmatprep.subr.mxu0 0.0
        %950 = vmatpush1.msra.mxu0 %v904
        %951 = vmatprep.subr.mxu0 0.0
        %952 = vmatpush1.msra.mxu0 %v905
        %953 = vmatprep.subr.mxu0 0.0
        %954 = vmatpush1.msra.mxu0 %v906
        %955 = vmatprep.subr.mxu0 0.0
        %956 = vmatpush1.msra.mxu0 0.0
        %957 = vmatprep.subr.mxu0 0.0
        %958 = vmatpush1.msra.mxu0 0.0
        %959 = vmatprep.subr.mxu0 0.0
        %960 = vmatpush1.msra.mxu0 0.0
        %961 = vmatprep.subr.mxu0 0.0
        %962 = vmatpush1.msra.mxu0 0.0
        %963 = vmatprep.subr.mxu0 0.0
        %964 = vmatpush1.msra.mxu0 0.0
        %965 = vmatprep.subr.mxu0 0.0
        %966 = vmatpush1.msra.mxu0 0.0
        %967 = vmatprep.subr.mxu0 0.0
        %968 = vmatpush1.msra.mxu0 0.0
        %969 = vmatprep.subr.mxu0 0.0
        %970 = vmatpush1.msra.mxu0 0.0
        %971 = vmatprep.subr.mxu0 0.0
        %972 = vmatpush1.msra.mxu0 0.0
        %973 = vmatprep.subr.mxu0 0.0
        %974 = vmatpush1.msra.mxu0 0.0
        %975 = vmatprep.subr.mxu0 0.0
        %976 = vmatpush1.msra.mxu0 0.0
        %977 = vmatprep.subr.mxu0 0.0
        %978 = vmatpush1.msra.mxu0 0.0
        %979 = vmatprep.subr.mxu0 0.0
        %980 = vmatpush1.msra.mxu0 0.0
        %981 = vmatprep.subr.mxu0 0.0
        %982 = vmatpush1.msra.mxu0 0.0
        %983 = vmatprep.subr.mxu0 0.0
        %984 = vmatpush1.msra.mxu0 0.0
        %985 = vmatprep.subr.mxu0 0.0
        %986 = vmatpush1.msra.mxu0 0.0
        %987 = vmatprep.subr.mxu0 0.0
        %988 = vmatpush1.msra.mxu0 0.0
        %989 = vmatprep.subr.mxu0 0.0
        %990 = vmatpush1.msra.mxu0 0.0
        %991 = vmatprep.subr.mxu0 0.0
        %992 = vmatpush1.msra.mxu0 0.0
        %993 = vmatprep.subr.mxu0 0.0
        %994 = vmatpush1.msra.mxu0 0.0
        %995 = vmatprep.subr.mxu0 0.0
        %996 = vmatpush1.msra.mxu0 0.0
        %997 = vmatprep.subr.mxu0 0.0
        %998 = vmatpush1.msra.mxu0 0.0
        %999 = vmatprep.subr.mxu0 0.0
        %1000 = vmatpush1.msra.mxu0 0.0
        %1001 = vmatprep.subr.mxu0 0.0
        %1002 = vmatpush1.msra.mxu0 0.0
        %1003 = vmatprep.subr.mxu0 0.0
        %1004 = vmatpush1.msra.mxu0 0.0
        %1005 = vmatprep.subr.mxu0 0.0
        %1006 = vmatpush1.msra.mxu0 0.0
        %1007 = vmatprep.subr.mxu0 0.0
        %1008 = vmatpush1.msra.mxu0 0.0
        %1009 = vmatprep.subr.mxu0 0.0
        %1010 = vmatpush1.msra.mxu0 0.0
        %1011 = vmatprep.mubr.f32.mxu0 0.0
        %1012 = vmatmul.mubr.f32.gmra.mrb[0].mxu0 %v621
        %v1013 = vpop.f32.mrb[0].mxu0
        %v1014 = vadd.f32 %v930, %v1013
        %v1015 = vpop.f32.mrb[0].mxu0
        %1016 = vdwg.mxu0
        %1017 = vmatprep.subr.mxu0 0.0
        %1018 = vmatpush1.msra.mxu0 %v907
        %1019 = vmatprep.subr.mxu0 0.0
        %1020 = vmatpush1.msra.mxu0 %v908
        %1021 = vmatprep.subr.mxu0 0.0
        %1022 = vmatpush1.msra.mxu0 %v909
        %1023 = vmatprep.subr.mxu0 0.0
        %1024 = vmatpush1.msra.mxu0 %v910
        %1025 = vmatprep.subr.mxu0 0.0
        %1026 = vmatpush1.msra.mxu0 0.0
        %1027 = vmatprep.subr.mxu0 0.0
        %1028 = vmatpush1.msra.mxu0 0.0
        %1029 = vmatprep.subr.mxu0 0.0
        %1030 = vmatpush1.msra.mxu0 0.0
        %1031 = vmatprep.subr.mxu0 0.0
        %1032 = vmatpush1.msra.mxu0 0.0
        %1033 = vmatprep.subr.mxu0 0.0
        %1034 = vmatpush1.msra.mxu0 0.0
        %1035 = vmatprep.subr.mxu0 0.0
        %1036 = vmatpush1.msra.mxu0 0.0
        %1037 = vmatprep.subr.mxu0 0.0
        %1038 = vmatpush1.msra.mxu0 0.0
        %1039 = vmatprep.subr.mxu0 0.0
        %1040 = vmatpush1.msra.mxu0 0.0
        %1041 = vmatprep.subr.mxu0 0.0
        %1042 = vmatpush1.msra.mxu0 0.0
        %1043 = vmatprep.subr.mxu0 0.0
        %1044 = vmatpush1.msra.mxu0 0.0
        %1045 = vmatprep.subr.mxu0 0.0
        %1046 = vmatpush1.msra.mxu0 0.0
        %1047 = vmatprep.subr.mxu0 0.0
        %1048 = vmatpush1.msra.mxu0 0.0
        %1049 = vmatprep.subr.mxu0 0.0
        %1050 = vmatpush1.msra.mxu0 0.0
        %1051 = vmatprep.subr.mxu0 0.0
        %1052 = vmatpush1.msra.mxu0 0.0
        %1053 = vmatprep.subr.mxu0 0.0
        %1054 = vmatpush1.msra.mxu0 0.0
        %1055 = vmatprep.subr.mxu0 0.0
        %1056 = vmatpush1.msra.mxu0 0.0
        %1057 = vmatprep.subr.mxu0 0.0
        %1058 = vmatpush1.msra.mxu0 0.0
        %1059 = vmatprep.subr.mxu0 0.0
        %1060 = vmatpush1.msra.mxu0 0.0
        %1061 = vmatprep.subr.mxu0 0.0
        %1062 = vmatpush1.msra.mxu0 0.0
        %1063 = vmatprep.subr.mxu0 0.0
        %1064 = vmatpush1.msra.mxu0 0.0
        %1065 = vmatprep.subr.mxu0 0.0
        %1066 = vmatpush1.msra.mxu0 0.0
        %1067 = vmatprep.subr.mxu0 0.0
        %1068 = vmatpush1.msra.mxu0 0.0
        %1069 = vmatprep.subr.mxu0 0.0
        %1070 = vmatpush1.msra.mxu0 0.0
        %1071 = vmatprep.subr.mxu0 0.0
        %1072 = vmatpush1.msra.mxu0 0.0
        %1073 = vmatprep.subr.mxu0 0.0
        %1074 = vmatpush1.msra.mxu0 0.0
        %1075 = vmatprep.subr.mxu0 0.0
        %1076 = vmatpush1.msra.mxu0 0.0
        %1077 = vmatprep.subr.mxu0 0.0
        %1078 = vmatpush1.msra.mxu0 0.0
        %1079 = vmatprep.subr.mxu0 0.0
        %1080 = vmatpush1.msra.mxu0 0.0
        %1081 = vmatprep.mubr.f32.mxu0 0.0
        %1082 = vmatmul.mubr.f32.gmra.mrb[0].mxu0 %v621
        %v1083 = vpop.f32.mrb[0].mxu0
        %v1084 = vadd.f32 %v934, %v1083
        %v1085 = vpop.f32.mrb[0].mxu0
        %1086 = vdwg.mxu0
        %1087 = vmatprep.subr.mxu0 0.0
        %1088 = vmatpush1.msra.mxu0 %v911
        %1089 = vmatprep.subr.mxu0 0.0
        %1090 = vmatpush1.msra.mxu0 %v912
        %1091 = vmatprep.subr.mxu0 0.0
        %1092 = vmatpush1.msra.mxu0 %v913
        %1093 = vmatprep.subr.mxu0 0.0
        %1094 = vmatpush1.msra.mxu0 %v914
        %1095 = vmatprep.subr.mxu0 0.0
        %1096 = vmatpush1.msra.mxu0 0.0
        %1097 = vmatprep.subr.mxu0 0.0
        %1098 = vmatpush1.msra.mxu0 0.0
        %1099 = vmatprep.subr.mxu0 0.0
        %1100 = vmatpush1.msra.mxu0 0.0
        %1101 = vmatprep.subr.mxu0 0.0
        %1102 = vmatpush1.msra.mxu0 0.0
        %1103 = vmatprep.subr.mxu0 0.0
        %1104 = vmatpush1.msra.mxu0 0.0
        %1105 = vmatprep.subr.mxu0 0.0
        %1106 = vmatpush1.msra.mxu0 0.0
        %1107 = vmatprep.subr.mxu0 0.0
        %1108 = vmatpush1.msra.mxu0 0.0
        %1109 = vmatprep.subr.mxu0 0.0
        %1110 = vmatpush1.msra.mxu0 0.0
        %1111 = vmatprep.subr.mxu0 0.0
        %1112 = vmatpush1.msra.mxu0 0.0
        %1113 = vmatprep.subr.mxu0 0.0
        %1114 = vmatpush1.msra.mxu0 0.0
        %1115 = vmatprep.subr.mxu0 0.0
        %1116 = vmatpush1.msra.mxu0 0.0
        %1117 = vmatprep.subr.mxu0 0.0
        %1118 = vmatpush1.msra.mxu0 0.0
        %1119 = vmatprep.subr.mxu0 0.0
        %1120 = vmatpush1.msra.mxu0 0.0
        %1121 = vmatprep.subr.mxu0 0.0
        %1122 = vmatpush1.msra.mxu0 0.0
        %1123 = vmatprep.subr.mxu0 0.0
        %1124 = vmatpush1.msra.mxu0 0.0
        %1125 = vmatprep.subr.mxu0 0.0
        %1126 = vmatpush1.msra.mxu0 0.0
        %1127 = vmatprep.subr.mxu0 0.0
        %1128 = vmatpush1.msra.mxu0 0.0
        %1129 = vmatprep.subr.mxu0 0.0
        %1130 = vmatpush1.msra.mxu0 0.0
        %1131 = vmatprep.subr.mxu0 0.0
        %1132 = vmatpush1.msra.mxu0 0.0
        %1133 = vmatprep.subr.mxu0 0.0
        %1134 = vmatpush1.msra.mxu0 0.0
        %1135 = vmatprep.subr.mxu0 0.0
        %1136 = vmatpush1.msra.mxu0 0.0
        %1137 = vmatprep.subr.mxu0 0.0
        %1138 = vmatpush1.msra.mxu0 0.0
        %1139 = vmatprep.subr.mxu0 0.0
        %1140 = vmatpush1.msra.mxu0 0.0
        %1141 = vmatprep.subr.mxu0 0.0
        %1142 = vmatpush1.msra.mxu0 0.0
        %1143 = vmatprep.subr.mxu0 0.0
        %1144 = vmatpush1.msra.mxu0 0.0
        %1145 = vmatprep.subr.mxu0 0.0
        %1146 = vmatpush1.msra.mxu0 0.0
        %1147 = vmatprep.subr.mxu0 0.0
        %1148 = vmatpush1.msra.mxu0 0.0
        %1149 = vmatprep.subr.mxu0 0.0
        %1150 = vmatpush1.msra.mxu0 0.0
        %1151 = vmatprep.mubr.f32.mxu0 0.0
        %1152 = vmatmul.mubr.f32.gmra.mrb[0].mxu0 %v621
        %v1153 = vpop.f32.mrb[0].mxu0
        %v1154 = vadd.f32 %v938, %v1153
        %v1155 = vpop.f32.mrb[0].mxu0
        %1156 = vdwg.mxu0
        %1157 = vmatprep.subr.mxu0 0.0
        %1158 = vmatpush1.msra.mxu0 %v915
        %1159 = vmatprep.subr.mxu0 0.0
        %1160 = vmatpush1.msra.mxu0 %v916
        %1161 = vmatprep.subr.mxu0 0.0
        %1162 = vmatpush1.msra.mxu0 %v917
        %1163 = vmatprep.subr.mxu0 0.0
        %1164 = vmatpush1.msra.mxu0 %v918
        %1165 = vmatprep.subr.mxu0 0.0
        %1166 = vmatpush1.msra.mxu0 0.0
        %1167 = vmatprep.subr.mxu0 0.0
        %1168 = vmatpush1.msra.mxu0 0.0
        %1169 = vmatprep.subr.mxu0 0.0
        %1170 = vmatpush1.msra.mxu0 0.0
        %1171 = vmatprep.subr.mxu0 0.0
        %1172 = vmatpush1.msra.mxu0 0.0
        %1173 = vmatprep.subr.mxu0 0.0
        %1174 = vmatpush1.msra.mxu0 0.0
        %1175 = vmatprep.subr.mxu0 0.0
        %1176 = vmatpush1.msra.mxu0 0.0
        %1177 = vmatprep.subr.mxu0 0.0
        %1178 = vmatpush1.msra.mxu0 0.0
        %1179 = vmatprep.subr.mxu0 0.0
        %1180 = vmatpush1.msra.mxu0 0.0
        %1181 = vmatprep.subr.mxu0 0.0
        %1182 = vmatpush1.msra.mxu0 0.0
        %1183 = vmatprep.subr.mxu0 0.0
        %1184 = vmatpush1.msra.mxu0 0.0
        %1185 = vmatprep.subr.mxu0 0.0
        %1186 = vmatpush1.msra.mxu0 0.0
        %1187 = vmatprep.subr.mxu0 0.0
        %1188 = vmatpush1.msra.mxu0 0.0
        %1189 = vmatprep.subr.mxu0 0.0
        %1190 = vmatpush1.msra.mxu0 0.0
        %1191 = vmatprep.subr.mxu0 0.0
        %1192 = vmatpush1.msra.mxu0 0.0
        %1193 = vmatprep.subr.mxu0 0.0
        %1194 = vmatpush1.msra.mxu0 0.0
        %1195 = vmatprep.subr.mxu0 0.0
        %1196 = vmatpush1.msra.mxu0 0.0
        %1197 = vmatprep.subr.mxu0 0.0
        %1198 = vmatpush1.msra.mxu0 0.0
        %1199 = vmatprep.subr.mxu0 0.0
        %1200 = vmatpush1.msra.mxu0 0.0
        %1201 = vmatprep.subr.mxu0 0.0
        %1202 = vmatpush1.msra.mxu0 0.0
        %1203 = vmatprep.subr.mxu0 0.0
        %1204 = vmatpush1.msra.mxu0 0.0
        %1205 = vmatprep.subr.mxu0 0.0
        %1206 = vmatpush1.msra.mxu0 0.0
        %1207 = vmatprep.subr.mxu0 0.0
        %1208 = vmatpush1.msra.mxu0 0.0
        %1209 = vmatprep.subr.mxu0 0.0
        %1210 = vmatpush1.msra.mxu0 0.0
        %1211 = vmatprep.subr.mxu0 0.0
        %1212 = vmatpush1.msra.mxu0 0.0
        %1213 = vmatprep.subr.mxu0 0.0
        %1214 = vmatpush1.msra.mxu0 0.0
        %1215 = vmatprep.subr.mxu0 0.0
        %1216 = vmatpush1.msra.mxu0 0.0
        %1217 = vmatprep.subr.mxu0 0.0
        %1218 = vmatpush1.msra.mxu0 0.0
        %1219 = vmatprep.subr.mxu0 0.0
        %1220 = vmatpush1.msra.mxu0 0.0
        %1221 = vmatprep.mubr.f32.mxu0 0.0
        %1222 = vmatmul.mubr.f32.gmra.mrb[0].mxu0 %v621
        %v1223 = vpop.f32.mrb[0].mxu0
        %v1224 = vadd.f32 %v942, %v1223
        %v1225 = vpop.f32.mrb[0].mxu0
        %1226 = vdwg.mxu0
        %v1227 = vld [vmem:[%s7] sm:$0xff]
        %v1228 = vld [vmem:[%s7 + $0x8] sm:$0xff]
        %v1229 = vld [vmem:[%s7 + $0x10] sm:$0xff]
        %v1230 = vld [vmem:[%s7 + $0x18] sm:$0xff]
        %v1231 = vld [vmem:[%s7 + $0x20] sm:$0xff]
        %v1232 = vld [vmem:[%s7 + $0x28] sm:$0xff]
        %v1233 = vld [vmem:[%s7 + $0x30] sm:$0xff]
        %v1234 = vld [vmem:[%s7 + $0x38] sm:$0xff]
        %v1235 = vld [vmem:[%s7 + $0x40] sm:$0xff]
        %v1236 = vld [vmem:[%s7 + $0x48] sm:$0xff]
        %v1237 = vld [vmem:[%s7 + $0x50] sm:$0xff]
        %v1238 = vld [vmem:[%s7 + $0x58] sm:$0xff]
        %v1239 = vld [vmem:[%s7 + $0x60] sm:$0xff]
        %v1240 = vld [vmem:[%s7 + $0x68] sm:$0xff]
        %v1241 = vld [vmem:[%s7 + $0x70] sm:$0xff]
        %v1242 = vld [vmem:[%s7 + $0x78] sm:$0xff]
        %v1243 = vld [vmem:[%s8] sm:$0x1]
        %v1244 = vld [vmem:[%s8 + $0x1] sm:$0x1]
        %v1245 = vld [vmem:[%s8 + $0x2] sm:$0x1]
        %v1246 = vld [vmem:[%s8 + $0x3] sm:$0x1]
        %v1251 = vlaneseq
        %v1252 = vshrl.u32 %v1251, 7
        %v1253 = vsub.s32 0, %v1252
        %v1254 = vrot.slane %v1243, %v1253
        %v1255 = vlaneseq
        %v1256 = vshrl.u32 %v1255, 7
        %v1257 = vsub.s32 0, %v1256
        %v1258 = vrot.slane %v1244, %v1257
        %v1259 = vlaneseq
        %v1260 = vshrl.u32 %v1259, 7
        %v1261 = vsub.s32 0, %v1260
        %v1262 = vrot.slane %v1245, %v1261
        %v1263 = vlaneseq
        %v1264 = vshrl.u32 %v1263, 7
        %v1265 = vsub.s32 0, %v1264
        %v1266 = vrot.slane %v1246, %v1265
        %1271 = vmatprep.subr.mxu0 0.0
        %1272 = vmatpush1.msra.mxu0 %v1227
        %1273 = vmatprep.subr.mxu0 0.0
        %1274 = vmatpush1.msra.mxu0 %v1228
        %1275 = vmatprep.subr.mxu0 0.0
        %1276 = vmatpush1.msra.mxu0 %v1229
        %1277 = vmatprep.subr.mxu0 0.0
        %1278 = vmatpush1.msra.mxu0 %v1230
        %1279 = vmatprep.subr.mxu0 0.0
        %1280 = vmatpush1.msra.mxu0 0.0
        %1281 = vmatprep.subr.mxu0 0.0
        %1282 = vmatpush1.msra.mxu0 0.0
        %1283 = vmatprep.subr.mxu0 0.0
        %1284 = vmatpush1.msra.mxu0 0.0
        %1285 = vmatprep.subr.mxu0 0.0
        %1286 = vmatpush1.msra.mxu0 0.0
        %1287 = vmatprep.subr.mxu0 0.0
        %1288 = vmatpush1.msra.mxu0 0.0
        %1289 = vmatprep.subr.mxu0 0.0
        %1290 = vmatpush1.msra.mxu0 0.0
        %1291 = vmatprep.subr.mxu0 0.0
        %1292 = vmatpush1.msra.mxu0 0.0
        %1293 = vmatprep.subr.mxu0 0.0
        %1294 = vmatpush1.msra.mxu0 0.0
        %1295 = vmatprep.subr.mxu0 0.0
        %1296 = vmatpush1.msra.mxu0 0.0
        %1297 = vmatprep.subr.mxu0 0.0
        %1298 = vmatpush1.msra.mxu0 0.0
        %1299 = vmatprep.subr.mxu0 0.0
        %1300 = vmatpush1.msra.mxu0 0.0
        %1301 = vmatprep.subr.mxu0 0.0
        %1302 = vmatpush1.msra.mxu0 0.0
        %1303 = vmatprep.subr.mxu0 0.0
        %1304 = vmatpush1.msra.mxu0 0.0
        %1305 = vmatprep.subr.mxu0 0.0
        %1306 = vmatpush1.msra.mxu0 0.0
        %1307 = vmatprep.subr.mxu0 0.0
        %1308 = vmatpush1.msra.mxu0 0.0
        %1309 = vmatprep.subr.mxu0 0.0
        %1310 = vmatpush1.msra.mxu0 0.0
        %1311 = vmatprep.subr.mxu0 0.0
        %1312 = vmatpush1.msra.mxu0 0.0
        %1313 = vmatprep.subr.mxu0 0.0
        %1314 = vmatpush1.msra.mxu0 0.0
        %1315 = vmatprep.subr.mxu0 0.0
        %1316 = vmatpush1.msra.mxu0 0.0
        %1317 = vmatprep.subr.mxu0 0.0
        %1318 = vmatpush1.msra.mxu0 0.0
        %1319 = vmatprep.subr.mxu0 0.0
        %1320 = vmatpush1.msra.mxu0 0.0
        %1321 = vmatprep.subr.mxu0 0.0
        %1322 = vmatpush1.msra.mxu0 0.0
        %1323 = vmatprep.subr.mxu0 0.0
        %1324 = vmatpush1.msra.mxu0 0.0
        %1325 = vmatprep.subr.mxu0 0.0
        %1326 = vmatpush1.msra.mxu0 0.0
        %1327 = vmatprep.subr.mxu0 0.0
        %1328 = vmatpush1.msra.mxu0 0.0
        %1329 = vmatprep.subr.mxu0 0.0
        %1330 = vmatpush1.msra.mxu0 0.0
        %1331 = vmatprep.subr.mxu0 0.0
        %1332 = vmatpush1.msra.mxu0 0.0
        %1333 = vmatprep.subr.mxu0 0.0
        %1334 = vmatpush1.msra.mxu0 0.0
        %1335 = vmatprep.mubr.f32.mxu0 0.0
        %1336 = vmatmul.mubr.f32.gmra.mrb[0].mxu0 %v621
        %v1337 = vpop.f32.mrb[0].mxu0
        %v1338 = vadd.f32 %v1254, %v1337
        %v1339 = vpop.f32.mrb[0].mxu0
        %1340 = vdwg.mxu0
        %1341 = vmatprep.subr.mxu0 0.0
        %1342 = vmatpush1.msra.mxu0 %v1231
        %1343 = vmatprep.subr.mxu0 0.0
        %1344 = vmatpush1.msra.mxu0 %v1232
        %1345 = vmatprep.subr.mxu0 0.0
        %1346 = vmatpush1.msra.mxu0 %v1233
        %1347 = vmatprep.subr.mxu0 0.0
        %1348 = vmatpush1.msra.mxu0 %v1234
        %1349 = vmatprep.subr.mxu0 0.0
        %1350 = vmatpush1.msra.mxu0 0.0
        %1351 = vmatprep.subr.mxu0 0.0
        %1352 = vmatpush1.msra.mxu0 0.0
        %1353 = vmatprep.subr.mxu0 0.0
        %1354 = vmatpush1.msra.mxu0 0.0
        %1355 = vmatprep.subr.mxu0 0.0
        %1356 = vmatpush1.msra.mxu0 0.0
        %1357 = vmatprep.subr.mxu0 0.0
        %1358 = vmatpush1.msra.mxu0 0.0
        %1359 = vmatprep.subr.mxu0 0.0
        %1360 = vmatpush1.msra.mxu0 0.0
        %1361 = vmatprep.subr.mxu0 0.0
        %1362 = vmatpush1.msra.mxu0 0.0
        %1363 = vmatprep.subr.mxu0 0.0
        %1364 = vmatpush1.msra.mxu0 0.0
        %1365 = vmatprep.subr.mxu0 0.0
        %1366 = vmatpush1.msra.mxu0 0.0
        %1367 = vmatprep.subr.mxu0 0.0
        %1368 = vmatpush1.msra.mxu0 0.0
        %1369 = vmatprep.subr.mxu0 0.0
        %1370 = vmatpush1.msra.mxu0 0.0
        %1371 = vmatprep.subr.mxu0 0.0
        %1372 = vmatpush1.msra.mxu0 0.0
        %1373 = vmatprep.subr.mxu0 0.0
        %1374 = vmatpush1.msra.mxu0 0.0
        %1375 = vmatprep.subr.mxu0 0.0
        %1376 = vmatpush1.msra.mxu0 0.0
        %1377 = vmatprep.subr.mxu0 0.0
        %1378 = vmatpush1.msra.mxu0 0.0
        %1379 = vmatprep.subr.mxu0 0.0
        %1380 = vmatpush1.msra.mxu0 0.0
        %1381 = vmatprep.subr.mxu0 0.0
        %1382 = vmatpush1.msra.mxu0 0.0
        %1383 = vmatprep.subr.mxu0 0.0
        %1384 = vmatpush1.msra.mxu0 0.0
        %1385 = vmatprep.subr.mxu0 0.0
        %1386 = vmatpush1.msra.mxu0 0.0
        %1387 = vmatprep.subr.mxu0 0.0
        %1388 = vmatpush1.msra.mxu0 0.0
        %1389 = vmatprep.subr.mxu0 0.0
        %1390 = vmatpush1.msra.mxu0 0.0
        %1391 = vmatprep.subr.mxu0 0.0
        %1392 = vmatpush1.msra.mxu0 0.0
        %1393 = vmatprep.subr.mxu0 0.0
        %1394 = vmatpush1.msra.mxu0 0.0
        %1395 = vmatprep.subr.mxu0 0.0
        %1396 = vmatpush1.msra.mxu0 0.0
        %1397 = vmatprep.subr.mxu0 0.0
        %1398 = vmatpush1.msra.mxu0 0.0
        %1399 = vmatprep.subr.mxu0 0.0
        %1400 = vmatpush1.msra.mxu0 0.0
        %1401 = vmatprep.subr.mxu0 0.0
        %1402 = vmatpush1.msra.mxu0 0.0
        %1403 = vmatprep.subr.mxu0 0.0
        %1404 = vmatpush1.msra.mxu0 0.0
        %1405 = vmatprep.mubr.f32.mxu0 0.0
        %1406 = vmatmul.mubr.f32.gmra.mrb[0].mxu0 %v621
        %v1407 = vpop.f32.mrb[0].mxu0
        %v1408 = vadd.f32 %v1258, %v1407
        %v1409 = vpop.f32.mrb[0].mxu0
        %1410 = vdwg.mxu0
        %1411 = vmatprep.subr.mxu0 0.0
        %1412 = vmatpush1.msra.mxu0 %v1235
        %1413 = vmatprep.subr.mxu0 0.0
        %1414 = vmatpush1.msra.mxu0 %v1236
        %1415 = vmatprep.subr.mxu0 0.0
        %1416 = vmatpush1.msra.mxu0 %v1237
        %1417 = vmatprep.subr.mxu0 0.0
        %1418 = vmatpush1.msra.mxu0 %v1238
        %1419 = vmatprep.subr.mxu0 0.0
        %1420 = vmatpush1.msra.mxu0 0.0
        %1421 = vmatprep.subr.mxu0 0.0
        %1422 = vmatpush1.msra.mxu0 0.0
        %1423 = vmatprep.subr.mxu0 0.0
        %1424 = vmatpush1.msra.mxu0 0.0
        %1425 = vmatprep.subr.mxu0 0.0
        %1426 = vmatpush1.msra.mxu0 0.0
        %1427 = vmatprep.subr.mxu0 0.0
        %1428 = vmatpush1.msra.mxu0 0.0
        %1429 = vmatprep.subr.mxu0 0.0
        %1430 = vmatpush1.msra.mxu0 0.0
        %1431 = vmatprep.subr.mxu0 0.0
        %1432 = vmatpush1.msra.mxu0 0.0
        %1433 = vmatprep.subr.mxu0 0.0
        %1434 = vmatpush1.msra.mxu0 0.0
        %1435 = vmatprep.subr.mxu0 0.0
        %1436 = vmatpush1.msra.mxu0 0.0
        %1437 = vmatprep.subr.mxu0 0.0
        %1438 = vmatpush1.msra.mxu0 0.0
        %1439 = vmatprep.subr.mxu0 0.0
        %1440 = vmatpush1.msra.mxu0 0.0
        %1441 = vmatprep.subr.mxu0 0.0
        %1442 = vmatpush1.msra.mxu0 0.0
        %1443 = vmatprep.subr.mxu0 0.0
        %1444 = vmatpush1.msra.mxu0 0.0
        %1445 = vmatprep.subr.mxu0 0.0
        %1446 = vmatpush1.msra.mxu0 0.0
        %1447 = vmatprep.subr.mxu0 0.0
        %1448 = vmatpush1.msra.mxu0 0.0
        %1449 = vmatprep.subr.mxu0 0.0
        %1450 = vmatpush1.msra.mxu0 0.0
        %1451 = vmatprep.subr.mxu0 0.0
        %1452 = vmatpush1.msra.mxu0 0.0
        %1453 = vmatprep.subr.mxu0 0.0
        %1454 = vmatpush1.msra.mxu0 0.0
        %1455 = vmatprep.subr.mxu0 0.0
        %1456 = vmatpush1.msra.mxu0 0.0
        %1457 = vmatprep.subr.mxu0 0.0
        %1458 = vmatpush1.msra.mxu0 0.0
        %1459 = vmatprep.subr.mxu0 0.0
        %1460 = vmatpush1.msra.mxu0 0.0
        %1461 = vmatprep.subr.mxu0 0.0
        %1462 = vmatpush1.msra.mxu0 0.0
        %1463 = vmatprep.subr.mxu0 0.0
        %1464 = vmatpush1.msra.mxu0 0.0
        %1465 = vmatprep.subr.mxu0 0.0
        %1466 = vmatpush1.msra.mxu0 0.0
        %1467 = vmatprep.subr.mxu0 0.0
        %1468 = vmatpush1.msra.mxu0 0.0
        %1469 = vmatprep.subr.mxu0 0.0
        %1470 = vmatpush1.msra.mxu0 0.0
        %1471 = vmatprep.subr.mxu0 0.0
        %1472 = vmatpush1.msra.mxu0 0.0
        %1473 = vmatprep.subr.mxu0 0.0
        %1474 = vmatpush1.msra.mxu0 0.0
        %1475 = vmatprep.mubr.f32.mxu0 0.0
        %1476 = vmatmul.mubr.f32.gmra.mrb[0].mxu0 %v621
        %v1477 = vpop.f32.mrb[0].mxu0
        %v1478 = vadd.f32 %v1262, %v1477
        %v1479 = vpop.f32.mrb[0].mxu0
        %1480 = vdwg.mxu0
        %1481 = vmatprep.subr.mxu0 0.0
        %1482 = vmatpush1.msra.mxu0 %v1239
        %1483 = vmatprep.subr.mxu0 0.0
        %1484 = vmatpush1.msra.mxu0 %v1240
        %1485 = vmatprep.subr.mxu0 0.0
        %1486 = vmatpush1.msra.mxu0 %v1241
        %1487 = vmatprep.subr.mxu0 0.0
        %1488 = vmatpush1.msra.mxu0 %v1242
        %1489 = vmatprep.subr.mxu0 0.0
        %1490 = vmatpush1.msra.mxu0 0.0
        %1491 = vmatprep.subr.mxu0 0.0
        %1492 = vmatpush1.msra.mxu0 0.0
        %1493 = vmatprep.subr.mxu0 0.0
        %1494 = vmatpush1.msra.mxu0 0.0
        %1495 = vmatprep.subr.mxu0 0.0
        %1496 = vmatpush1.msra.mxu0 0.0
        %1497 = vmatprep.subr.mxu0 0.0
        %1498 = vmatpush1.msra.mxu0 0.0
        %1499 = vmatprep.subr.mxu0 0.0
        %1500 = vmatpush1.msra.mxu0 0.0
        %1501 = vmatprep.subr.mxu0 0.0
        %1502 = vmatpush1.msra.mxu0 0.0
        %1503 = vmatprep.subr.mxu0 0.0
        %1504 = vmatpush1.msra.mxu0 0.0
        %1505 = vmatprep.subr.mxu0 0.0
        %1506 = vmatpush1.msra.mxu0 0.0
        %1507 = vmatprep.subr.mxu0 0.0
        %1508 = vmatpush1.msra.mxu0 0.0
        %1509 = vmatprep.subr.mxu0 0.0
        %1510 = vmatpush1.msra.mxu0 0.0
        %1511 = vmatprep.subr.mxu0 0.0
        %1512 = vmatpush1.msra.mxu0 0.0
        %1513 = vmatprep.subr.mxu0 0.0
        %1514 = vmatpush1.msra.mxu0 0.0
        %1515 = vmatprep.subr.mxu0 0.0
        %1516 = vmatpush1.msra.mxu0 0.0
        %1517 = vmatprep.subr.mxu0 0.0
        %1518 = vmatpush1.msra.mxu0 0.0
        %1519 = vmatprep.subr.mxu0 0.0
        %1520 = vmatpush1.msra.mxu0 0.0
        %1521 = vmatprep.subr.mxu0 0.0
        %1522 = vmatpush1.msra.mxu0 0.0
        %1523 = vmatprep.subr.mxu0 0.0
        %1524 = vmatpush1.msra.mxu0 0.0
        %1525 = vmatprep.subr.mxu0 0.0
        %1526 = vmatpush1.msra.mxu0 0.0
        %1527 = vmatprep.subr.mxu0 0.0
        %1528 = vmatpush1.msra.mxu0 0.0
        %1529 = vmatprep.subr.mxu0 0.0
        %1530 = vmatpush1.msra.mxu0 0.0
        %1531 = vmatprep.subr.mxu0 0.0
        %1532 = vmatpush1.msra.mxu0 0.0
        %1533 = vmatprep.subr.mxu0 0.0
        %1534 = vmatpush1.msra.mxu0 0.0
        %1535 = vmatprep.subr.mxu0 0.0
        %1536 = vmatpush1.msra.mxu0 0.0
        %1537 = vmatprep.subr.mxu0 0.0
        %1538 = vmatpush1.msra.mxu0 0.0
        %1539 = vmatprep.subr.mxu0 0.0
        %1540 = vmatpush1.msra.mxu0 0.0
        %1541 = vmatprep.subr.mxu0 0.0
        %1542 = vmatpush1.msra.mxu0 0.0
        %1543 = vmatprep.subr.mxu0 0.0
        %1544 = vmatpush1.msra.mxu0 0.0
        %1545 = vmatprep.mubr.f32.mxu0 0.0
        %1546 = vmatmul.mubr.f32.gmra.mrb[0].mxu0 %v621
        %v1547 = vpop.f32.mrb[0].mxu0
        %v1548 = vadd.f32 %v1266, %v1547
        %v1549 = vpop.f32.mrb[0].mxu0
        %1550 = vdwg.mxu0
        %vm1551 = vcmask 64512
        %v1553 = vsel %vm1551, %v690, 0
        %v1556 = vsel %vm1551, %v1014, 0
        %1558 = vmatprep.subr.mxu0 0.0
        %1559 = vmatpush1.xpose.msra.mxu0 %v1556
        %1560 = vmatprep.subr.mxu0 0.0
        %1561 = vmatpush1.xpose.msra.mxu0 0.0
        %1562 = vmatprep.subr.mxu0 0.0
        %1563 = vmatpush1.xpose.msra.mxu0 0.0
        %1564 = vmatprep.subr.mxu0 0.0
        %1565 = vmatpush1.xpose.msra.mxu0 0.0
        %1566 = vmatprep.subr.mxu0 0.0
        %1567 = vmatpush1.xpose.msra.mxu0 0.0
        %1568 = vmatprep.subr.mxu0 0.0
        %1569 = vmatpush1.xpose.msra.mxu0 0.0
        %1570 = vmatprep.subr.mxu0 0.0
        %1571 = vmatpush1.xpose.msra.mxu0 0.0
        %1572 = vmatprep.subr.mxu0 0.0
        %1573 = vmatpush1.xpose.msra.mxu0 0.0
        %1574 = vmatprep.subr.mxu0 0.0
        %1575 = vmatpush1.xpose.msra.mxu0 0.0
        %1576 = vmatprep.subr.mxu0 0.0
        %1577 = vmatpush1.xpose.msra.mxu0 0.0
        %1578 = vmatprep.subr.mxu0 0.0
        %1579 = vmatpush1.xpose.msra.mxu0 0.0
        %1580 = vmatprep.subr.mxu0 0.0
        %1581 = vmatpush1.xpose.msra.mxu0 0.0
        %1582 = vmatprep.subr.mxu0 0.0
        %1583 = vmatpush1.xpose.msra.mxu0 0.0
        %1584 = vmatprep.subr.mxu0 0.0
        %1585 = vmatpush1.xpose.msra.mxu0 0.0
        %1586 = vmatprep.subr.mxu0 0.0
        %1587 = vmatpush1.xpose.msra.mxu0 0.0
        %1588 = vmatprep.subr.mxu0 0.0
        %1589 = vmatpush1.xpose.msra.mxu0 0.0
        %1590 = vmatprep.subr.mxu0 0.0
        %1591 = vmatpush1.xpose.msra.mxu0 0.0
        %1592 = vmatprep.subr.mxu0 0.0
        %1593 = vmatpush1.xpose.msra.mxu0 0.0
        %1594 = vmatprep.subr.mxu0 0.0
        %1595 = vmatpush1.xpose.msra.mxu0 0.0
        %1596 = vmatprep.subr.mxu0 0.0
        %1597 = vmatpush1.xpose.msra.mxu0 0.0
        %1598 = vmatprep.subr.mxu0 0.0
        %1599 = vmatpush1.xpose.msra.mxu0 0.0
        %1600 = vmatprep.subr.mxu0 0.0
        %1601 = vmatpush1.xpose.msra.mxu0 0.0
        %1602 = vmatprep.subr.mxu0 0.0
        %1603 = vmatpush1.xpose.msra.mxu0 0.0
        %1604 = vmatprep.subr.mxu0 0.0
        %1605 = vmatpush1.xpose.msra.mxu0 0.0
        %1606 = vmatprep.subr.mxu0 0.0
        %1607 = vmatpush1.xpose.msra.mxu0 0.0
        %1608 = vmatprep.subr.mxu0 0.0
        %1609 = vmatpush1.xpose.msra.mxu0 0.0
        %1610 = vmatprep.subr.mxu0 0.0
        %1611 = vmatpush1.xpose.msra.mxu0 0.0
        %1612 = vmatprep.subr.mxu0 0.0
        %1613 = vmatpush1.xpose.msra.mxu0 0.0
        %1614 = vmatprep.subr.mxu0 0.0
        %1615 = vmatpush1.xpose.msra.mxu0 0.0
        %1616 = vmatprep.subr.mxu0 0.0
        %1617 = vmatpush1.xpose.msra.mxu0 0.0
        %1618 = vmatprep.subr.mxu0 0.0
        %1619 = vmatpush1.xpose.msra.mxu0 0.0
        %1620 = vmatprep.subr.mxu0 0.0
        %1621 = vmatpush1.xpose.msra.mxu0 0.0
        %1622 = vmatprep.mubr.f32.mxu0 0.0
        %1623 = vmatmul.mubr.f32.gmra.mrb[0].mxu0 %v1553
        %v1624 = vpop.f32.mrb[0].mxu0
        %v1625 = vadd.f32 0.0, %v1624
        %v1626 = vpop.f32.mrb[0].mxu0
        %1627 = vdwg.mxu0
        %v1629 = vsel %vm1551, %v760, 0
        %v1632 = vsel %vm1551, %v1084, 0
        %1634 = vmatprep.subr.mxu0 0.0
        %1635 = vmatpush1.xpose.msra.mxu0 %v1632
        %1636 = vmatprep.subr.mxu0 0.0
        %1637 = vmatpush1.xpose.msra.mxu0 0.0
        %1638 = vmatprep.subr.mxu0 0.0
        %1639 = vmatpush1.xpose.msra.mxu0 0.0
        %1640 = vmatprep.subr.mxu0 0.0
        %1641 = vmatpush1.xpose.msra.mxu0 0.0
        %1642 = vmatprep.subr.mxu0 0.0
        %1643 = vmatpush1.xpose.msra.mxu0 0.0
        %1644 = vmatprep.subr.mxu0 0.0
        %1645 = vmatpush1.xpose.msra.mxu0 0.0
        %1646 = vmatprep.subr.mxu0 0.0
        %1647 = vmatpush1.xpose.msra.mxu0 0.0
        %1648 = vmatprep.subr.mxu0 0.0
        %1649 = vmatpush1.xpose.msra.mxu0 0.0
        %1650 = vmatprep.subr.mxu0 0.0
        %1651 = vmatpush1.xpose.msra.mxu0 0.0
        %1652 = vmatprep.subr.mxu0 0.0
        %1653 = vmatpush1.xpose.msra.mxu0 0.0
        %1654 = vmatprep.subr.mxu0 0.0
        %1655 = vmatpush1.xpose.msra.mxu0 0.0
        %1656 = vmatprep.subr.mxu0 0.0
        %1657 = vmatpush1.xpose.msra.mxu0 0.0
        %1658 = vmatprep.subr.mxu0 0.0
        %1659 = vmatpush1.xpose.msra.mxu0 0.0
        %1660 = vmatprep.subr.mxu0 0.0
        %1661 = vmatpush1.xpose.msra.mxu0 0.0
        %1662 = vmatprep.subr.mxu0 0.0
        %1663 = vmatpush1.xpose.msra.mxu0 0.0
        %1664 = vmatprep.subr.mxu0 0.0
        %1665 = vmatpush1.xpose.msra.mxu0 0.0
        %1666 = vmatprep.subr.mxu0 0.0
        %1667 = vmatpush1.xpose.msra.mxu0 0.0
        %1668 = vmatprep.subr.mxu0 0.0
        %1669 = vmatpush1.xpose.msra.mxu0 0.0
        %1670 = vmatprep.subr.mxu0 0.0
        %1671 = vmatpush1.xpose.msra.mxu0 0.0
        %1672 = vmatprep.subr.mxu0 0.0
        %1673 = vmatpush1.xpose.msra.mxu0 0.0
        %1674 = vmatprep.subr.mxu0 0.0
        %1675 = vmatpush1.xpose.msra.mxu0 0.0
        %1676 = vmatprep.subr.mxu0 0.0
        %1677 = vmatpush1.xpose.msra.mxu0 0.0
        %1678 = vmatprep.subr.mxu0 0.0
        %1679 = vmatpush1.xpose.msra.mxu0 0.0
        %1680 = vmatprep.subr.mxu0 0.0
        %1681 = vmatpush1.xpose.msra.mxu0 0.0
        %1682 = vmatprep.subr.mxu0 0.0
        %1683 = vmatpush1.xpose.msra.mxu0 0.0
        %1684 = vmatprep.subr.mxu0 0.0
        %1685 = vmatpush1.xpose.msra.mxu0 0.0
        %1686 = vmatprep.subr.mxu0 0.0
        %1687 = vmatpush1.xpose.msra.mxu0 0.0
        %1688 = vmatprep.subr.mxu0 0.0
        %1689 = vmatpush1.xpose.msra.mxu0 0.0
        %1690 = vmatprep.subr.mxu0 0.0
        %1691 = vmatpush1.xpose.msra.mxu0 0.0
        %1692 = vmatprep.subr.mxu0 0.0
        %1693 = vmatpush1.xpose.msra.mxu0 0.0
        %1694 = vmatprep.subr.mxu0 0.0
        %1695 = vmatpush1.xpose.msra.mxu0 0.0
        %1696 = vmatprep.subr.mxu0 0.0
        %1697 = vmatpush1.xpose.msra.mxu0 0.0
        %1698 = vmatprep.mubr.f32.mxu0 0.0
        %1699 = vmatmul.mubr.f32.gmra.mrb[0].mxu0 %v1629
        %v1700 = vpop.f32.mrb[0].mxu0
        %v1701 = vadd.f32 0.0, %v1700
        %v1702 = vpop.f32.mrb[0].mxu0
        %1703 = vdwg.mxu0
        %v1705 = vsel %vm1551, %v830, 0
        %v1708 = vsel %vm1551, %v1154, 0
        %1710 = vmatprep.subr.mxu0 0.0
        %1711 = vmatpush1.xpose.msra.mxu0 %v1708
        %1712 = vmatprep.subr.mxu0 0.0
        %1713 = vmatpush1.xpose.msra.mxu0 0.0
        %1714 = vmatprep.subr.mxu0 0.0
        %1715 = vmatpush1.xpose.msra.mxu0 0.0
        %1716 = vmatprep.subr.mxu0 0.0
        %1717 = vmatpush1.xpose.msra.mxu0 0.0
        %1718 = vmatprep.subr.mxu0 0.0
        %1719 = vmatpush1.xpose.msra.mxu0 0.0
        %1720 = vmatprep.subr.mxu0 0.0
        %1721 = vmatpush1.xpose.msra.mxu0 0.0
        %1722 = vmatprep.subr.mxu0 0.0
        %1723 = vmatpush1.xpose.msra.mxu0 0.0
        %1724 = vmatprep.subr.mxu0 0.0
        %1725 = vmatpush1.xpose.msra.mxu0 0.0
        %1726 = vmatprep.subr.mxu0 0.0
        %1727 = vmatpush1.xpose.msra.mxu0 0.0
        %1728 = vmatprep.subr.mxu0 0.0
        %1729 = vmatpush1.xpose.msra.mxu0 0.0
        %1730 = vmatprep.subr.mxu0 0.0
        %1731 = vmatpush1.xpose.msra.mxu0 0.0
        %1732 = vmatprep.subr.mxu0 0.0
        %1733 = vmatpush1.xpose.msra.mxu0 0.0
        %1734 = vmatprep.subr.mxu0 0.0
        %1735 = vmatpush1.xpose.msra.mxu0 0.0
        %1736 = vmatprep.subr.mxu0 0.0
        %1737 = vmatpush1.xpose.msra.mxu0 0.0
        %1738 = vmatprep.subr.mxu0 0.0
        %1739 = vmatpush1.xpose.msra.mxu0 0.0
        %1740 = vmatprep.subr.mxu0 0.0
        %1741 = vmatpush1.xpose.msra.mxu0 0.0
        %1742 = vmatprep.subr.mxu0 0.0
        %1743 = vmatpush1.xpose.msra.mxu0 0.0
        %1744 = vmatprep.subr.mxu0 0.0
        %1745 = vmatpush1.xpose.msra.mxu0 0.0
        %1746 = vmatprep.subr.mxu0 0.0
        %1747 = vmatpush1.xpose.msra.mxu0 0.0
        %1748 = vmatprep.subr.mxu0 0.0
        %1749 = vmatpush1.xpose.msra.mxu0 0.0
        %1750 = vmatprep.subr.mxu0 0.0
        %1751 = vmatpush1.xpose.msra.mxu0 0.0
        %1752 = vmatprep.subr.mxu0 0.0
        %1753 = vmatpush1.xpose.msra.mxu0 0.0
        %1754 = vmatprep.subr.mxu0 0.0
        %1755 = vmatpush1.xpose.msra.mxu0 0.0
        %1756 = vmatprep.subr.mxu0 0.0
        %1757 = vmatpush1.xpose.msra.mxu0 0.0
        %1758 = vmatprep.subr.mxu0 0.0
        %1759 = vmatpush1.xpose.msra.mxu0 0.0
        %1760 = vmatprep.subr.mxu0 0.0
        %1761 = vmatpush1.xpose.msra.mxu0 0.0
        %1762 = vmatprep.subr.mxu0 0.0
        %1763 = vmatpush1.xpose.msra.mxu0 0.0
        %1764 = vmatprep.subr.mxu0 0.0
        %1765 = vmatpush1.xpose.msra.mxu0 0.0
        %1766 = vmatprep.subr.mxu0 0.0
        %1767 = vmatpush1.xpose.msra.mxu0 0.0
        %1768 = vmatprep.subr.mxu0 0.0
        %1769 = vmatpush1.xpose.msra.mxu0 0.0
        %1770 = vmatprep.subr.mxu0 0.0
        %1771 = vmatpush1.xpose.msra.mxu0 0.0
        %1772 = vmatprep.subr.mxu0 0.0
        %1773 = vmatpush1.xpose.msra.mxu0 0.0
        %1774 = vmatprep.mubr.f32.mxu0 0.0
        %1775 = vmatmul.mubr.f32.gmra.mrb[0].mxu0 %v1705
        %v1776 = vpop.f32.mrb[0].mxu0
        %v1777 = vadd.f32 0.0, %v1776
        %v1778 = vpop.f32.mrb[0].mxu0
        %1779 = vdwg.mxu0
        %v1781 = vsel %vm1551, %v900, 0
        %v1784 = vsel %vm1551, %v1224, 0
        %1786 = vmatprep.subr.mxu0 0.0
        %1787 = vmatpush1.xpose.msra.mxu0 %v1784
        %1788 = vmatprep.subr.mxu0 0.0
        %1789 = vmatpush1.xpose.msra.mxu0 0.0
        %1790 = vmatprep.subr.mxu0 0.0
        %1791 = vmatpush1.xpose.msra.mxu0 0.0
        %1792 = vmatprep.subr.mxu0 0.0
        %1793 = vmatpush1.xpose.msra.mxu0 0.0
        %1794 = vmatprep.subr.mxu0 0.0
        %1795 = vmatpush1.xpose.msra.mxu0 0.0
        %1796 = vmatprep.subr.mxu0 0.0
        %1797 = vmatpush1.xpose.msra.mxu0 0.0
        %1798 = vmatprep.subr.mxu0 0.0
        %1799 = vmatpush1.xpose.msra.mxu0 0.0
        %1800 = vmatprep.subr.mxu0 0.0
        %1801 = vmatpush1.xpose.msra.mxu0 0.0
        %1802 = vmatprep.subr.mxu0 0.0
        %1803 = vmatpush1.xpose.msra.mxu0 0.0
        %1804 = vmatprep.subr.mxu0 0.0
        %1805 = vmatpush1.xpose.msra.mxu0 0.0
        %1806 = vmatprep.subr.mxu0 0.0
        %1807 = vmatpush1.xpose.msra.mxu0 0.0
        %1808 = vmatprep.subr.mxu0 0.0
        %1809 = vmatpush1.xpose.msra.mxu0 0.0
        %1810 = vmatprep.subr.mxu0 0.0
        %1811 = vmatpush1.xpose.msra.mxu0 0.0
        %1812 = vmatprep.subr.mxu0 0.0
        %1813 = vmatpush1.xpose.msra.mxu0 0.0
        %1814 = vmatprep.subr.mxu0 0.0
        %1815 = vmatpush1.xpose.msra.mxu0 0.0
        %1816 = vmatprep.subr.mxu0 0.0
        %1817 = vmatpush1.xpose.msra.mxu0 0.0
        %1818 = vmatprep.subr.mxu0 0.0
        %1819 = vmatpush1.xpose.msra.mxu0 0.0
        %1820 = vmatprep.subr.mxu0 0.0
        %1821 = vmatpush1.xpose.msra.mxu0 0.0
        %1822 = vmatprep.subr.mxu0 0.0
        %1823 = vmatpush1.xpose.msra.mxu0 0.0
        %1824 = vmatprep.subr.mxu0 0.0
        %1825 = vmatpush1.xpose.msra.mxu0 0.0
        %1826 = vmatprep.subr.mxu0 0.0
        %1827 = vmatpush1.xpose.msra.mxu0 0.0
        %1828 = vmatprep.subr.mxu0 0.0
        %1829 = vmatpush1.xpose.msra.mxu0 0.0
        %1830 = vmatprep.subr.mxu0 0.0
        %1831 = vmatpush1.xpose.msra.mxu0 0.0
        %1832 = vmatprep.subr.mxu0 0.0
        %1833 = vmatpush1.xpose.msra.mxu0 0.0
        %1834 = vmatprep.subr.mxu0 0.0
        %1835 = vmatpush1.xpose.msra.mxu0 0.0
        %1836 = vmatprep.subr.mxu0 0.0
        %1837 = vmatpush1.xpose.msra.mxu0 0.0
        %1838 = vmatprep.subr.mxu0 0.0
        %1839 = vmatpush1.xpose.msra.mxu0 0.0
        %1840 = vmatprep.subr.mxu0 0.0
        %1841 = vmatpush1.xpose.msra.mxu0 0.0
        %1842 = vmatprep.subr.mxu0 0.0
        %1843 = vmatpush1.xpose.msra.mxu0 0.0
        %1844 = vmatprep.subr.mxu0 0.0
        %1845 = vmatpush1.xpose.msra.mxu0 0.0
        %1846 = vmatprep.subr.mxu0 0.0
        %1847 = vmatpush1.xpose.msra.mxu0 0.0
        %1848 = vmatprep.subr.mxu0 0.0
        %1849 = vmatpush1.xpose.msra.mxu0 0.0
        %1850 = vmatprep.mubr.f32.mxu0 0.0
        %1851 = vmatmul.mubr.f32.gmra.mrb[0].mxu0 %v1781
        %v1852 = vpop.f32.mrb[0].mxu0
        %v1853 = vadd.f32 0.0, %v1852
        %v1854 = vpop.f32.mrb[0].mxu0
        %1855 = vdwg.mxu0
        %v1856 = vsel %vm1551, %v1625, -inf
        %1857 = vmax.xlane.f32.xlu0 %v1856
        %v1858 = vpop.xlane.xlu0 %1857
        %v1859 = vsel %vm1551, %v1701, -inf
        %1860 = vmax.xlane.f32.xlu0 %v1859
        %v1861 = vpop.xlane.xlu0 %1860
        %v1862 = vsel %vm1551, %v1777, -inf
        %1863 = vmax.xlane.f32.xlu0 %v1862
        %v1864 = vpop.xlane.xlu0 %1863
        %v1865 = vsel %vm1551, %v1853, -inf
        %1866 = vmax.xlane.f32.xlu0 %v1865
        %v1867 = vpop.xlane.xlu0 %1866
        %v1868 = vsub.f32 %v1625, %v1858
        %v1869 = vsub.f32 %v1701, %v1861
        %v1870 = vsub.f32 %v1777, %v1864
        %v1871 = vsub.f32 %v1853, %v1867
        %v1872 = vmul.f32 %v1868, 1.442695
        %v1873 = vpow.pop %v1872
        %v1874 = vmul.f32 %v1869, 1.442695
        %v1875 = vpow.pop %v1874
        %v1876 = vmul.f32 %v1870, 1.442695
        %v1877 = vpow.pop %v1876
        %v1878 = vmul.f32 %v1871, 1.442695
        %v1879 = vpow.pop %v1878
        %v1880 = vsel %vm1551, %v1873, 0.0
        %1881 = vadd.xlane.f32.xlu0 %v1880
        %v1882 = vpop.xlane.xlu0 %1881
        %v1883 = vsel %vm1551, %v1875, 0.0
        %1884 = vadd.xlane.f32.xlu0 %v1883
        %v1885 = vpop.xlane.xlu0 %1884
        %v1886 = vsel %vm1551, %v1877, 0.0
        %1887 = vadd.xlane.f32.xlu0 %v1886
        %v1888 = vpop.xlane.xlu0 %1887
        %v1889 = vsel %vm1551, %v1879, 0.0
        %1890 = vadd.xlane.f32.xlu0 %v1889
        %v1891 = vpop.xlane.xlu0 %1890
        %v1892 = vrcp.pop %v1882
        %v1893 = vrcp.pop %v1885
        %v1894 = vrcp.pop %v1888
        %v1895 = vrcp.pop %v1891
        %v1896 = vmul.f32 %v1873, %v1892
        %v1897 = vmul.f32 %v1875, %v1893
        %v1898 = vmul.f32 %v1877, %v1894
        %v1899 = vmul.f32 %v1879, %v1895
        %v1901 = vsel %vm1551, %v1896, 0
        %1903 = vmatprep.subr.mxu0 0.0
        %1904 = vmatpush1.msra.mxu0 %v1338
        %1905 = vmatprep.subr.mxu0 0.0
        %1906 = vmatpush1.msra.mxu0 0.0
        %1907 = vmatprep.subr.mxu0 0.0
        %1908 = vmatpush1.msra.mxu0 0.0
        %1909 = vmatprep.subr.mxu0 0.0
        %1910 = vmatpush1.msra.mxu0 0.0
        %1911 = vmatprep.subr.mxu0 0.0
        %1912 = vmatpush1.msra.mxu0 0.0
        %1913 = vmatprep.subr.mxu0 0.0
        %1914 = vmatpush1.msra.mxu0 0.0
        %1915 = vmatprep.subr.mxu0 0.0
        %1916 = vmatpush1.msra.mxu0 0.0
        %1917 = vmatprep.subr.mxu0 0.0
        %1918 = vmatpush1.msra.mxu0 0.0
        %1919 = vmatprep.subr.mxu0 0.0
        %1920 = vmatpush1.msra.mxu0 0.0
        %1921 = vmatprep.subr.mxu0 0.0
        %1922 = vmatpush1.msra.mxu0 0.0
        %1923 = vmatprep.subr.mxu0 0.0
        %1924 = vmatpush1.msra.mxu0 0.0
        %1925 = vmatprep.subr.mxu0 0.0
        %1926 = vmatpush1.msra.mxu0 0.0
        %1927 = vmatprep.subr.mxu0 0.0
        %1928 = vmatpush1.msra.mxu0 0.0
        %1929 = vmatprep.subr.mxu0 0.0
        %1930 = vmatpush1.msra.mxu0 0.0
        %1931 = vmatprep.subr.mxu0 0.0
        %1932 = vmatpush1.msra.mxu0 0.0
        %1933 = vmatprep.subr.mxu0 0.0
        %1934 = vmatpush1.msra.mxu0 0.0
        %1935 = vmatprep.subr.mxu0 0.0
        %1936 = vmatpush1.msra.mxu0 0.0
        %1937 = vmatprep.subr.mxu0 0.0
        %1938 = vmatpush1.msra.mxu0 0.0
        %1939 = vmatprep.subr.mxu0 0.0
        %1940 = vmatpush1.msra.mxu0 0.0
        %1941 = vmatprep.subr.mxu0 0.0
        %1942 = vmatpush1.msra.mxu0 0.0
        %1943 = vmatprep.subr.mxu0 0.0
        %1944 = vmatpush1.msra.mxu0 0.0
        %1945 = vmatprep.subr.mxu0 0.0
        %1946 = vmatpush1.msra.mxu0 0.0
        %1947 = vmatprep.subr.mxu0 0.0
        %1948 = vmatpush1.msra.mxu0 0.0
        %1949 = vmatprep.subr.mxu0 0.0
        %1950 = vmatpush1.msra.mxu0 0.0
        %1951 = vmatprep.subr.mxu0 0.0
        %1952 = vmatpush1.msra.mxu0 0.0
        %1953 = vmatprep.subr.mxu0 0.0
        %1954 = vmatpush1.msra.mxu0 0.0
        %1955 = vmatprep.subr.mxu0 0.0
        %1956 = vmatpush1.msra.mxu0 0.0
        %1957 = vmatprep.subr.mxu0 0.0
        %1958 = vmatpush1.msra.mxu0 0.0
        %1959 = vmatprep.subr.mxu0 0.0
        %1960 = vmatpush1.msra.mxu0 0.0
        %1961 = vmatprep.subr.mxu0 0.0
        %1962 = vmatpush1.msra.mxu0 0.0
        %1963 = vmatprep.subr.mxu0 0.0
        %1964 = vmatpush1.msra.mxu0 0.0
        %1965 = vmatprep.subr.mxu0 0.0
        %1966 = vmatpush1.msra.mxu0 0.0
        %1967 = vmatprep.mubr.f32.mxu0 0.0
        %1968 = vmatmul.mubr.f32.gmra.mrb[0].mxu0 %v1901
        %v1969 = vpop.f32.mrb[0].mxu0
        %v1970 = vadd.f32 0.0, %v1969
        %v1971 = vpop.f32.mrb[0].mxu0
        %1972 = vdwg.mxu0
        %v1974 = vsel %vm1551, %v1897, 0
        %1976 = vmatprep.subr.mxu0 0.0
        %1977 = vmatpush1.msra.mxu0 %v1408
        %1978 = vmatprep.subr.mxu0 0.0
        %1979 = vmatpush1.msra.mxu0 0.0
        %1980 = vmatprep.subr.mxu0 0.0
        %1981 = vmatpush1.msra.mxu0 0.0
        %1982 = vmatprep.subr.mxu0 0.0
        %1983 = vmatpush1.msra.mxu0 0.0
        %1984 = vmatprep.subr.mxu0 0.0
        %1985 = vmatpush1.msra.mxu0 0.0
        %1986 = vmatprep.subr.mxu0 0.0
        %1987 = vmatpush1.msra.mxu0 0.0
        %1988 = vmatprep.subr.mxu0 0.0
        %1989 = vmatpush1.msra.mxu0 0.0
        %1990 = vmatprep.subr.mxu0 0.0
        %1991 = vmatpush1.msra.mxu0 0.0
        %1992 = vmatprep.subr.mxu0 0.0
        %1993 = vmatpush1.msra.mxu0 0.0
        %1994 = vmatprep.subr.mxu0 0.0
        %1995 = vmatpush1.msra.mxu0 0.0
        %1996 = vmatprep.subr.mxu0 0.0
        %1997 = vmatpush1.msra.mxu0 0.0
        %1998 = vmatprep.subr.mxu0 0.0
        %1999 = vmatpush1.msra.mxu0 0.0
        %2000 = vmatprep.subr.mxu0 0.0
        %2001 = vmatpush1.msra.mxu0 0.0
        %2002 = vmatprep.subr.mxu0 0.0
        %2003 = vmatpush1.msra.mxu0 0.0
        %2004 = vmatprep.subr.mxu0 0.0
        %2005 = vmatpush1.msra.mxu0 0.0
        %2006 = vmatprep.subr.mxu0 0.0
        %2007 = vmatpush1.msra.mxu0 0.0
        %2008 = vmatprep.subr.mxu0 0.0
        %2009 = vmatpush1.msra.mxu0 0.0
        %2010 = vmatprep.subr.mxu0 0.0
        %2011 = vmatpush1.msra.mxu0 0.0
        %2012 = vmatprep.subr.mxu0 0.0
        %2013 = vmatpush1.msra.mxu0 0.0
        %2014 = vmatprep.subr.mxu0 0.0
        %2015 = vmatpush1.msra.mxu0 0.0
        %2016 = vmatprep.subr.mxu0 0.0
        %2017 = vmatpush1.msra.mxu0 0.0
        %2018 = vmatprep.subr.mxu0 0.0
        %2019 = vmatpush1.msra.mxu0 0.0
        %2020 = vmatprep.subr.mxu0 0.0
        %2021 = vmatpush1.msra.mxu0 0.0
        %2022 = vmatprep.subr.mxu0 0.0
        %2023 = vmatpush1.msra.mxu0 0.0
        %2024 = vmatprep.subr.mxu0 0.0
        %2025 = vmatpush1.msra.mxu0 0.0
        %2026 = vmatprep.subr.mxu0 0.0
        %2027 = vmatpush1.msra.mxu0 0.0
        %2028 = vmatprep.subr.mxu0 0.0
        %2029 = vmatpush1.msra.mxu0 0.0
        %2030 = vmatprep.subr.mxu0 0.0
        %2031 = vmatpush1.msra.mxu0 0.0
        %2032 = vmatprep.subr.mxu0 0.0
        %2033 = vmatpush1.msra.mxu0 0.0
        %2034 = vmatprep.subr.mxu0 0.0
        %2035 = vmatpush1.msra.mxu0 0.0
        %2036 = vmatprep.subr.mxu0 0.0
        %2037 = vmatpush1.msra.mxu0 0.0
        %2038 = vmatprep.subr.mxu0 0.0
        %2039 = vmatpush1.msra.mxu0 0.0
        %2040 = vmatprep.mubr.f32.mxu0 0.0
        %2041 = vmatmul.mubr.f32.gmra.mrb[0].mxu0 %v1974
        %v2042 = vpop.f32.mrb[0].mxu0
        %v2043 = vadd.f32 0.0, %v2042
        %v2044 = vpop.f32.mrb[0].mxu0
        %2045 = vdwg.mxu0
        %v2047 = vsel %vm1551, %v1898, 0
        %2049 = vmatprep.subr.mxu0 0.0
        %2050 = vmatpush1.msra.mxu0 %v1478
        %2051 = vmatprep.subr.mxu0 0.0
        %2052 = vmatpush1.msra.mxu0 0.0
        %2053 = vmatprep.subr.mxu0 0.0
        %2054 = vmatpush1.msra.mxu0 0.0
        %2055 = vmatprep.subr.mxu0 0.0
        %2056 = vmatpush1.msra.mxu0 0.0
        %2057 = vmatprep.subr.mxu0 0.0
        %2058 = vmatpush1.msra.mxu0 0.0
        %2059 = vmatprep.subr.mxu0 0.0
        %2060 = vmatpush1.msra.mxu0 0.0
        %2061 = vmatprep.subr.mxu0 0.0
        %2062 = vmatpush1.msra.mxu0 0.0
        %2063 = vmatprep.subr.mxu0 0.0
        %2064 = vmatpush1.msra.mxu0 0.0
        %2065 = vmatprep.subr.mxu0 0.0
        %2066 = vmatpush1.msra.mxu0 0.0
        %2067 = vmatprep.subr.mxu0 0.0
        %2068 = vmatpush1.msra.mxu0 0.0
        %2069 = vmatprep.subr.mxu0 0.0
        %2070 = vmatpush1.msra.mxu0 0.0
        %2071 = vmatprep.subr.mxu0 0.0
        %2072 = vmatpush1.msra.mxu0 0.0
        %2073 = vmatprep.subr.mxu0 0.0
        %2074 = vmatpush1.msra.mxu0 0.0
        %2075 = vmatprep.subr.mxu0 0.0
        %2076 = vmatpush1.msra.mxu0 0.0
        %2077 = vmatprep.subr.mxu0 0.0
        %2078 = vmatpush1.msra.mxu0 0.0
        %2079 = vmatprep.subr.mxu0 0.0
        %2080 = vmatpush1.msra.mxu0 0.0
        %2081 = vmatprep.subr.mxu0 0.0
        %2082 = vmatpush1.msra.mxu0 0.0
        %2083 = vmatprep.subr.mxu0 0.0
        %2084 = vmatpush1.msra.mxu0 0.0
        %2085 = vmatprep.subr.mxu0 0.0
        %2086 = vmatpush1.msra.mxu0 0.0
        %2087 = vmatprep.subr.mxu0 0.0
        %2088 = vmatpush1.msra.mxu0 0.0
        %2089 = vmatprep.subr.mxu0 0.0
        %2090 = vmatpush1.msra.mxu0 0.0
        %2091 = vmatprep.subr.mxu0 0.0
        %2092 = vmatpush1.msra.mxu0 0.0
        %2093 = vmatprep.subr.mxu0 0.0
        %2094 = vmatpush1.msra.mxu0 0.0
        %2095 = vmatprep.subr.mxu0 0.0
        %2096 = vmatpush1.msra.mxu0 0.0
        %2097 = vmatprep.subr.mxu0 0.0
        %2098 = vmatpush1.msra.mxu0 0.0
        %2099 = vmatprep.subr.mxu0 0.0
        %2100 = vmatpush1.msra.mxu0 0.0
        %2101 = vmatprep.subr.mxu0 0.0
        %2102 = vmatpush1.msra.mxu0 0.0
        %2103 = vmatprep.subr.mxu0 0.0
        %2104 = vmatpush1.msra.mxu0 0.0
        %2105 = vmatprep.subr.mxu0 0.0
        %2106 = vmatpush1.msra.mxu0 0.0
        %2107 = vmatprep.subr.mxu0 0.0
        %2108 = vmatpush1.msra.mxu0 0.0
        %2109 = vmatprep.subr.mxu0 0.0
        %2110 = vmatpush1.msra.mxu0 0.0
        %2111 = vmatprep.subr.mxu0 0.0
        %2112 = vmatpush1.msra.mxu0 0.0
        %2113 = vmatprep.mubr.f32.mxu0 0.0
        %2114 = vmatmul.mubr.f32.gmra.mrb[0].mxu0 %v2047
        %v2115 = vpop.f32.mrb[0].mxu0
        %v2116 = vadd.f32 0.0, %v2115
        %v2117 = vpop.f32.mrb[0].mxu0
        %2118 = vdwg.mxu0
        %v2120 = vsel %vm1551, %v1899, 0
        %2122 = vmatprep.subr.mxu0 0.0
        %2123 = vmatpush1.msra.mxu0 %v1548
        %2124 = vmatprep.subr.mxu0 0.0
        %2125 = vmatpush1.msra.mxu0 0.0
        %2126 = vmatprep.subr.mxu0 0.0
        %2127 = vmatpush1.msra.mxu0 0.0
        %2128 = vmatprep.subr.mxu0 0.0
        %2129 = vmatpush1.msra.mxu0 0.0
        %2130 = vmatprep.subr.mxu0 0.0
        %2131 = vmatpush1.msra.mxu0 0.0
        %2132 = vmatprep.subr.mxu0 0.0
        %2133 = vmatpush1.msra.mxu0 0.0
        %2134 = vmatprep.subr.mxu0 0.0
        %2135 = vmatpush1.msra.mxu0 0.0
        %2136 = vmatprep.subr.mxu0 0.0
        %2137 = vmatpush1.msra.mxu0 0.0
        %2138 = vmatprep.subr.mxu0 0.0
        %2139 = vmatpush1.msra.mxu0 0.0
        %2140 = vmatprep.subr.mxu0 0.0
        %2141 = vmatpush1.msra.mxu0 0.0
        %2142 = vmatprep.subr.mxu0 0.0
        %2143 = vmatpush1.msra.mxu0 0.0
        %2144 = vmatprep.subr.mxu0 0.0
        %2145 = vmatpush1.msra.mxu0 0.0
        %2146 = vmatprep.subr.mxu0 0.0
        %2147 = vmatpush1.msra.mxu0 0.0
        %2148 = vmatprep.subr.mxu0 0.0
        %2149 = vmatpush1.msra.mxu0 0.0
        %2150 = vmatprep.subr.mxu0 0.0
        %2151 = vmatpush1.msra.mxu0 0.0
        %2152 = vmatprep.subr.mxu0 0.0
        %2153 = vmatpush1.msra.mxu0 0.0
        %2154 = vmatprep.subr.mxu0 0.0
        %2155 = vmatpush1.msra.mxu0 0.0
        %2156 = vmatprep.subr.mxu0 0.0
        %2157 = vmatpush1.msra.mxu0 0.0
        %2158 = vmatprep.subr.mxu0 0.0
        %2159 = vmatpush1.msra.mxu0 0.0
        %2160 = vmatprep.subr.mxu0 0.0
        %2161 = vmatpush1.msra.mxu0 0.0
        %2162 = vmatprep.subr.mxu0 0.0
        %2163 = vmatpush1.msra.mxu0 0.0
        %2164 = vmatprep.subr.mxu0 0.0
        %2165 = vmatpush1.msra.mxu0 0.0
        %2166 = vmatprep.subr.mxu0 0.0
        %2167 = vmatpush1.msra.mxu0 0.0
        %2168 = vmatprep.subr.mxu0 0.0
        %2169 = vmatpush1.msra.mxu0 0.0
        %2170 = vmatprep.subr.mxu0 0.0
        %2171 = vmatpush1.msra.mxu0 0.0
        %2172 = vmatprep.subr.mxu0 0.0
        %2173 = vmatpush1.msra.mxu0 0.0
        %2174 = vmatprep.subr.mxu0 0.0
        %2175 = vmatpush1.msra.mxu0 0.0
        %2176 = vmatprep.subr.mxu0 0.0
        %2177 = vmatpush1.msra.mxu0 0.0
        %2178 = vmatprep.subr.mxu0 0.0
        %2179 = vmatpush1.msra.mxu0 0.0
        %2180 = vmatprep.subr.mxu0 0.0
        %2181 = vmatpush1.msra.mxu0 0.0
        %2182 = vmatprep.subr.mxu0 0.0
        %2183 = vmatpush1.msra.mxu0 0.0
        %2184 = vmatprep.subr.mxu0 0.0
        %2185 = vmatpush1.msra.mxu0 0.0
        %2186 = vmatprep.mubr.f32.mxu0 0.0
        %2187 = vmatmul.mubr.f32.gmra.mrb[0].mxu0 %v2120
        %v2188 = vpop.f32.mrb[0].mxu0
        %v2189 = vadd.f32 0.0, %v2188
        %v2190 = vpop.f32.mrb[0].mxu0
        %2191 = vdwg.mxu0
        %v2192 = vld [vmem:[%s9] sm:$0xff]
        %v2193 = vld [vmem:[%s9 + $0x8] sm:$0xff]
        %v2194 = vld [vmem:[%s9 + $0x10] sm:$0xff]
        %v2195 = vld [vmem:[%s9 + $0x18] sm:$0xff]
        %v2197 = vsel %vm1551, %v1970, 0
        %2199 = vmatprep.subr.mxu0 0.0
        %2200 = vmatpush1.msra.mxu0 %v2192
        %2201 = vmatprep.subr.mxu0 0.0
        %2202 = vmatpush1.msra.mxu0 0.0
        %2203 = vmatprep.subr.mxu0 0.0
        %2204 = vmatpush1.msra.mxu0 0.0
        %2205 = vmatprep.subr.mxu0 0.0
        %2206 = vmatpush1.msra.mxu0 0.0
        %2207 = vmatprep.subr.mxu0 0.0
        %2208 = vmatpush1.msra.mxu0 0.0
        %2209 = vmatprep.subr.mxu0 0.0
        %2210 = vmatpush1.msra.mxu0 0.0
        %2211 = vmatprep.subr.mxu0 0.0
        %2212 = vmatpush1.msra.mxu0 0.0
        %2213 = vmatprep.subr.mxu0 0.0
        %2214 = vmatpush1.msra.mxu0 0.0
        %2215 = vmatprep.subr.mxu0 0.0
        %2216 = vmatpush1.msra.mxu0 0.0
        %2217 = vmatprep.subr.mxu0 0.0
        %2218 = vmatpush1.msra.mxu0 0.0
        %2219 = vmatprep.subr.mxu0 0.0
        %2220 = vmatpush1.msra.mxu0 0.0
        %2221 = vmatprep.subr.mxu0 0.0
        %2222 = vmatpush1.msra.mxu0 0.0
        %2223 = vmatprep.subr.mxu0 0.0
        %2224 = vmatpush1.msra.mxu0 0.0
        %2225 = vmatprep.subr.mxu0 0.0
        %2226 = vmatpush1.msra.mxu0 0.0
        %2227 = vmatprep.subr.mxu0 0.0
        %2228 = vmatpush1.msra.mxu0 0.0
        %2229 = vmatprep.subr.mxu0 0.0
        %2230 = vmatpush1.msra.mxu0 0.0
        %2231 = vmatprep.subr.mxu0 0.0
        %2232 = vmatpush1.msra.mxu0 0.0
        %2233 = vmatprep.subr.mxu0 0.0
        %2234 = vmatpush1.msra.mxu0 0.0
        %2235 = vmatprep.subr.mxu0 0.0
        %2236 = vmatpush1.msra.mxu0 0.0
        %2237 = vmatprep.subr.mxu0 0.0
        %2238 = vmatpush1.msra.mxu0 0.0
        %2239 = vmatprep.subr.mxu0 0.0
        %2240 = vmatpush1.msra.mxu0 0.0
        %2241 = vmatprep.subr.mxu0 0.0
        %2242 = vmatpush1.msra.mxu0 0.0
        %2243 = vmatprep.subr.mxu0 0.0
        %2244 = vmatpush1.msra.mxu0 0.0
        %2245 = vmatprep.subr.mxu0 0.0
        %2246 = vmatpush1.msra.mxu0 0.0
        %2247 = vmatprep.subr.mxu0 0.0
        %2248 = vmatpush1.msra.mxu0 0.0
        %2249 = vmatprep.subr.mxu0 0.0
        %2250 = vmatpush1.msra.mxu0 0.0
        %2251 = vmatprep.subr.mxu0 0.0
        %2252 = vmatpush1.msra.mxu0 0.0
        %2253 = vmatprep.subr.mxu0 0.0
        %2254 = vmatpush1.msra.mxu0 0.0
        %2255 = vmatprep.subr.mxu0 0.0
        %2256 = vmatpush1.msra.mxu0 0.0
        %2257 = vmatprep.subr.mxu0 0.0
        %2258 = vmatpush1.msra.mxu0 0.0
        %2259 = vmatprep.subr.mxu0 0.0
        %2260 = vmatpush1.msra.mxu0 0.0
        %2261 = vmatprep.subr.mxu0 0.0
        %2262 = vmatpush1.msra.mxu0 0.0
        %2263 = vmatprep.mubr.f32.mxu0 0.0
        %2264 = vmatmul.mubr.f32.gmra.mrb[0].mxu0 %v2197
        %v2265 = vpop.f32.mrb[0].mxu0
        %v2266 = vadd.f32 0.0, %v2265
        %v2267 = vpop.f32.mrb[0].mxu0
        %2268 = vdwg.mxu0
        %v2270 = vsel %vm1551, %v2043, 0
        %2272 = vmatprep.subr.mxu0 0.0
        %2273 = vmatpush1.msra.mxu0 %v2193
        %2274 = vmatprep.subr.mxu0 0.0
        %2275 = vmatpush1.msra.mxu0 0.0
        %2276 = vmatprep.subr.mxu0 0.0
        %2277 = vmatpush1.msra.mxu0 0.0
        %2278 = vmatprep.subr.mxu0 0.0
        %2279 = vmatpush1.msra.mxu0 0.0
        %2280 = vmatprep.subr.mxu0 0.0
        %2281 = vmatpush1.msra.mxu0 0.0
        %2282 = vmatprep.subr.mxu0 0.0
        %2283 = vmatpush1.msra.mxu0 0.0
        %2284 = vmatprep.subr.mxu0 0.0
        %2285 = vmatpush1.msra.mxu0 0.0
        %2286 = vmatprep.subr.mxu0 0.0
        %2287 = vmatpush1.msra.mxu0 0.0
        %2288 = vmatprep.subr.mxu0 0.0
        %2289 = vmatpush1.msra.mxu0 0.0
        %2290 = vmatprep.subr.mxu0 0.0
        %2291 = vmatpush1.msra.mxu0 0.0
        %2292 = vmatprep.subr.mxu0 0.0
        %2293 = vmatpush1.msra.mxu0 0.0
        %2294 = vmatprep.subr.mxu0 0.0
        %2295 = vmatpush1.msra.mxu0 0.0
        %2296 = vmatprep.subr.mxu0 0.0
        %2297 = vmatpush1.msra.mxu0 0.0
        %2298 = vmatprep.subr.mxu0 0.0
        %2299 = vmatpush1.msra.mxu0 0.0
        %2300 = vmatprep.subr.mxu0 0.0
        %2301 = vmatpush1.msra.mxu0 0.0
        %2302 = vmatprep.subr.mxu0 0.0
        %2303 = vmatpush1.msra.mxu0 0.0
        %2304 = vmatprep.subr.mxu0 0.0
        %2305 = vmatpush1.msra.mxu0 0.0
        %2306 = vmatprep.subr.mxu0 0.0
        %2307 = vmatpush1.msra.mxu0 0.0
        %2308 = vmatprep.subr.mxu0 0.0
        %2309 = vmatpush1.msra.mxu0 0.0
        %2310 = vmatprep.subr.mxu0 0.0
        %2311 = vmatpush1.msra.mxu0 0.0
        %2312 = vmatprep.subr.mxu0 0.0
        %2313 = vmatpush1.msra.mxu0 0.0
        %2314 = vmatprep.subr.mxu0 0.0
        %2315 = vmatpush1.msra.mxu0 0.0
        %2316 = vmatprep.subr.mxu0 0.0
        %2317 = vmatpush1.msra.mxu0 0.0
        %2318 = vmatprep.subr.mxu0 0.0
        %2319 = vmatpush1.msra.mxu0 0.0
        %2320 = vmatprep.subr.mxu0 0.0
        %2321 = vmatpush1.msra.mxu0 0.0
        %2322 = vmatprep.subr.mxu0 0.0
        %2323 = vmatpush1.msra.mxu0 0.0
        %2324 = vmatprep.subr.mxu0 0.0
        %2325 = vmatpush1.msra.mxu0 0.0
        %2326 = vmatprep.subr.mxu0 0.0
        %2327 = vmatpush1.msra.mxu0 0.0
        %2328 = vmatprep.subr.mxu0 0.0
        %2329 = vmatpush1.msra.mxu0 0.0
        %2330 = vmatprep.subr.mxu0 0.0
        %2331 = vmatpush1.msra.mxu0 0.0
        %2332 = vmatprep.subr.mxu0 0.0
        %2333 = vmatpush1.msra.mxu0 0.0
        %2334 = vmatprep.subr.mxu0 0.0
        %2335 = vmatpush1.msra.mxu0 0.0
        %2336 = vmatprep.mubr.f32.mxu0 0.0
        %2337 = vmatmul.mubr.f32.gmra.mrb[0].mxu0 %v2270
        %v2338 = vpop.f32.mrb[0].mxu0
        %v2339 = vadd.f32 0.0, %v2338
        %v2340 = vpop.f32.mrb[0].mxu0
        %2341 = vdwg.mxu0
        %v2343 = vsel %vm1551, %v2116, 0
        %2345 = vmatprep.subr.mxu0 0.0
        %2346 = vmatpush1.msra.mxu0 %v2194
        %2347 = vmatprep.subr.mxu0 0.0
        %2348 = vmatpush1.msra.mxu0 0.0
        %2349 = vmatprep.subr.mxu0 0.0
        %2350 = vmatpush1.msra.mxu0 0.0
        %2351 = vmatprep.subr.mxu0 0.0
        %2352 = vmatpush1.msra.mxu0 0.0
        %2353 = vmatprep.subr.mxu0 0.0
        %2354 = vmatpush1.msra.mxu0 0.0
        %2355 = vmatprep.subr.mxu0 0.0
        %2356 = vmatpush1.msra.mxu0 0.0
        %2357 = vmatprep.subr.mxu0 0.0
        %2358 = vmatpush1.msra.mxu0 0.0
        %2359 = vmatprep.subr.mxu0 0.0
        %2360 = vmatpush1.msra.mxu0 0.0
        %2361 = vmatprep.subr.mxu0 0.0
        %2362 = vmatpush1.msra.mxu0 0.0
        %2363 = vmatprep.subr.mxu0 0.0
        %2364 = vmatpush1.msra.mxu0 0.0
        %2365 = vmatprep.subr.mxu0 0.0
        %2366 = vmatpush1.msra.mxu0 0.0
        %2367 = vmatprep.subr.mxu0 0.0
        %2368 = vmatpush1.msra.mxu0 0.0
        %2369 = vmatprep.subr.mxu0 0.0
        %2370 = vmatpush1.msra.mxu0 0.0
        %2371 = vmatprep.subr.mxu0 0.0
        %2372 = vmatpush1.msra.mxu0 0.0
        %2373 = vmatprep.subr.mxu0 0.0
        %2374 = vmatpush1.msra.mxu0 0.0
        %2375 = vmatprep.subr.mxu0 0.0
        %2376 = vmatpush1.msra.mxu0 0.0
        %2377 = vmatprep.subr.mxu0 0.0
        %2378 = vmatpush1.msra.mxu0 0.0
        %2379 = vmatprep.subr.mxu0 0.0
        %2380 = vmatpush1.msra.mxu0 0.0
        %2381 = vmatprep.subr.mxu0 0.0
        %2382 = vmatpush1.msra.mxu0 0.0
        %2383 = vmatprep.subr.mxu0 0.0
        %2384 = vmatpush1.msra.mxu0 0.0
        %2385 = vmatprep.subr.mxu0 0.0
        %2386 = vmatpush1.msra.mxu0 0.0
        %2387 = vmatprep.subr.mxu0 0.0
        %2388 = vmatpush1.msra.mxu0 0.0
        %2389 = vmatprep.subr.mxu0 0.0
        %2390 = vmatpush1.msra.mxu0 0.0
        %2391 = vmatprep.subr.mxu0 0.0
        %2392 = vmatpush1.msra.mxu0 0.0
        %2393 = vmatprep.subr.mxu0 0.0
        %2394 = vmatpush1.msra.mxu0 0.0
        %2395 = vmatprep.subr.mxu0 0.0
        %2396 = vmatpush1.msra.mxu0 0.0
        %2397 = vmatprep.subr.mxu0 0.0
        %2398 = vmatpush1.msra.mxu0 0.0
        %2399 = vmatprep.subr.mxu0 0.0
        %2400 = vmatpush1.msra.mxu0 0.0
        %2401 = vmatprep.subr.mxu0 0.0
        %2402 = vmatpush1.msra.mxu0 0.0
        %2403 = vmatprep.subr.mxu0 0.0
        %2404 = vmatpush1.msra.mxu0 0.0
        %2405 = vmatprep.subr.mxu0 0.0
        %2406 = vmatpush1.msra.mxu0 0.0
        %2407 = vmatprep.subr.mxu0 0.0
        %2408 = vmatpush1.msra.mxu0 0.0
        %2409 = vmatprep.mubr.f32.mxu0 0.0
        %2410 = vmatmul.mubr.f32.gmra.mrb[0].mxu0 %v2343
        %v2411 = vpop.f32.mrb[0].mxu0
        %v2412 = vadd.f32 0.0, %v2411
        %v2413 = vpop.f32.mrb[0].mxu0
        %2414 = vdwg.mxu0
        %v2416 = vsel %vm1551, %v2189, 0
        %2418 = vmatprep.subr.mxu0 0.0
        %2419 = vmatpush1.msra.mxu0 %v2195
        %2420 = vmatprep.subr.mxu0 0.0
        %2421 = vmatpush1.msra.mxu0 0.0
        %2422 = vmatprep.subr.mxu0 0.0
        %2423 = vmatpush1.msra.mxu0 0.0
        %2424 = vmatprep.subr.mxu0 0.0
        %2425 = vmatpush1.msra.mxu0 0.0
        %2426 = vmatprep.subr.mxu0 0.0
        %2427 = vmatpush1.msra.mxu0 0.0
        %2428 = vmatprep.subr.mxu0 0.0
        %2429 = vmatpush1.msra.mxu0 0.0
        %2430 = vmatprep.subr.mxu0 0.0
        %2431 = vmatpush1.msra.mxu0 0.0
        %2432 = vmatprep.subr.mxu0 0.0
        %2433 = vmatpush1.msra.mxu0 0.0
        %2434 = vmatprep.subr.mxu0 0.0
        %2435 = vmatpush1.msra.mxu0 0.0
        %2436 = vmatprep.subr.mxu0 0.0
        %2437 = vmatpush1.msra.mxu0 0.0
        %2438 = vmatprep.subr.mxu0 0.0
        %2439 = vmatpush1.msra.mxu0 0.0
        %2440 = vmatprep.subr.mxu0 0.0
        %2441 = vmatpush1.msra.mxu0 0.0
        %2442 = vmatprep.subr.mxu0 0.0
        %2443 = vmatpush1.msra.mxu0 0.0
        %2444 = vmatprep.subr.mxu0 0.0
        %2445 = vmatpush1.msra.mxu0 0.0
        %2446 = vmatprep.subr.mxu0 0.0
        %2447 = vmatpush1.msra.mxu0 0.0
        %2448 = vmatprep.subr.mxu0 0.0
        %2449 = vmatpush1.msra.mxu0 0.0
        %2450 = vmatprep.subr.mxu0 0.0
        %2451 = vmatpush1.msra.mxu0 0.0
        %2452 = vmatprep.subr.mxu0 0.0
        %2453 = vmatpush1.msra.mxu0 0.0
        %2454 = vmatprep.subr.mxu0 0.0
        %2455 = vmatpush1.msra.mxu0 0.0
        %2456 = vmatprep.subr.mxu0 0.0
        %2457 = vmatpush1.msra.mxu0 0.0
        %2458 = vmatprep.subr.mxu0 0.0
        %2459 = vmatpush1.msra.mxu0 0.0
        %2460 = vmatprep.subr.mxu0 0.0
        %2461 = vmatpush1.msra.mxu0 0.0
        %2462 = vmatprep.subr.mxu0 0.0
        %2463 = vmatpush1.msra.mxu0 0.0
        %2464 = vmatprep.subr.mxu0 0.0
        %2465 = vmatpush1.msra.mxu0 0.0
        %2466 = vmatprep.subr.mxu0 0.0
        %2467 = vmatpush1.msra.mxu0 0.0
        %2468 = vmatprep.subr.mxu0 0.0
        %2469 = vmatpush1.msra.mxu0 0.0
        %2470 = vmatprep.subr.mxu0 0.0
        %2471 = vmatpush1.msra.mxu0 0.0
        %2472 = vmatprep.subr.mxu0 0.0
        %2473 = vmatpush1.msra.mxu0 0.0
        %2474 = vmatprep.subr.mxu0 0.0
        %2475 = vmatpush1.msra.mxu0 0.0
        %2476 = vmatprep.subr.mxu0 0.0
        %2477 = vmatpush1.msra.mxu0 0.0
        %2478 = vmatprep.subr.mxu0 0.0
        %2479 = vmatpush1.msra.mxu0 0.0
        %2480 = vmatprep.subr.mxu0 0.0
        %2481 = vmatpush1.msra.mxu0 0.0
        %2482 = vmatprep.mubr.f32.mxu0 0.0
        %2483 = vmatmul.mubr.f32.gmra.mrb[0].mxu0 %v2416
        %v2484 = vpop.f32.mrb[0].mxu0
        %v2485 = vadd.f32 0.0, %v2484
        %v2486 = vpop.f32.mrb[0].mxu0
        %2487 = vdwg.mxu0
        %v2488 = vsel %vm547, %v2266, 0.0
        %v2489 = vsel %vm547, %v2339, 0.0
        %v2490 = vadd.f32 %v2488, %v2489
        %v2491 = vsel %vm547, %v2412, 0.0
        %v2492 = vadd.f32 %v2490, %v2491
        %v2493 = vsel %vm547, %v2485, 0.0
        %v2494 = vadd.f32 %v2492, %v2493
        %v2495 = vld [vmem:[%s10] sm:$0x1]
        %v2497 = vlaneseq
        %v2498 = vshrl.u32 %v2497, 7
        %v2499 = vsub.s32 0, %v2498
        %v2500 = vrot.slane %v2495, %v2499
        %v2502 = vadd.f32 %v2494, %v2500
        %v2503 = vadd.f32 %v544, %v2502
        %v2504 = vld [vmem:[%s11] sm:$0x1]
        %v2505 = vld [vmem:[%s12] sm:$0x1]
        %v2506 = vsel %vm547, %v2503, 0.0
        %2507 = vadd.xlane.f32.xlu0 %v2506
        %v2508 = vpop.xlane.xlu0 %2507
        %v2509 = vmul.f32 %v2508, %v551
        %v2510 = vsub.f32 %v2503, %v2509
        %v2511 = vmul.f32 %v2510, %v2510
        %v2512 = vsel %vm547, %v2511, 0.0
        %2513 = vadd.xlane.f32.xlu0 %v2512
        %v2514 = vpop.xlane.xlu0 %2513
        %v2515 = vmul.f32 %v2514, %v551
        %v2516 = vadd.f32 %v2515, 1e-05
        %v2517 = vrsqrt.pop %v2516
        %v2518 = vmul.f32 %v2510, %v2517
        %v2520 = vlaneseq
        %v2521 = vshrl.u32 %v2520, 7
        %v2522 = vsub.s32 0, %v2521
        %v2523 = vrot.slane %v2504, %v2522
        %v2525 = vmul.f32 %v2518, %v2523
        %v2527 = vlaneseq
        %v2528 = vshrl.u32 %v2527, 7
        %v2529 = vsub.s32 0, %v2528
        %v2530 = vrot.slane %v2505, %v2529
        %v2532 = vadd.f32 %v2525, %v2530
        %v2533 = vld [vmem:[%s13] sm:$0xff]
        %v2534 = vld [vmem:[%s13 + $0x8] sm:$0xff]
        %v2535 = vld [vmem:[%s13 + $0x10] sm:$0xff]
        %v2536 = vld [vmem:[%s13 + $0x18] sm:$0xff]
        %v2537 = vld [vmem:[%s14] sm:$0x1]
        %v2539 = vlaneseq
        %v2540 = vshrl.u32 %v2539, 7
        %v2541 = vsub.s32 0, %v2540
        %v2542 = vrot.slane %v2537, %v2541
        %v2545 = vsel %vm547, %v2532, 0
        %2547 = vmatprep.subr.mxu0 0.0
        %2548 = vmatpush1.msra.mxu0 %v2533
        %2549 = vmatprep.subr.mxu0 0.0
        %2550 = vmatpush1.msra.mxu0 %v2534
        %2551 = vmatprep.subr.mxu0 0.0
        %2552 = vmatpush1.msra.mxu0 %v2535
        %2553 = vmatprep.subr.mxu0 0.0
        %2554 = vmatpush1.msra.mxu0 %v2536
        %2555 = vmatprep.subr.mxu0 0.0
        %2556 = vmatpush1.msra.mxu0 0.0
        %2557 = vmatprep.subr.mxu0 0.0
        %2558 = vmatpush1.msra.mxu0 0.0
        %2559 = vmatprep.subr.mxu0 0.0
        %2560 = vmatpush1.msra.mxu0 0.0
        %2561 = vmatprep.subr.mxu0 0.0
        %2562 = vmatpush1.msra.mxu0 0.0
        %2563 = vmatprep.subr.mxu0 0.0
        %2564 = vmatpush1.msra.mxu0 0.0
        %2565 = vmatprep.subr.mxu0 0.0
        %2566 = vmatpush1.msra.mxu0 0.0
        %2567 = vmatprep.subr.mxu0 0.0
        %2568 = vmatpush1.msra.mxu0 0.0
        %2569 = vmatprep.subr.mxu0 0.0
        %2570 = vmatpush1.msra.mxu0 0.0
        %2571 = vmatprep.subr.mxu0 0.0
        %2572 = vmatpush1.msra.mxu0 0.0
        %2573 = vmatprep.subr.mxu0 0.0
        %2574 = vmatpush1.msra.mxu0 0.0
        %2575 = vmatprep.subr.mxu0 0.0
        %2576 = vmatpush1.msra.mxu0 0.0
        %2577 = vmatprep.subr.mxu0 0.0
        %2578 = vmatpush1.msra.mxu0 0.0
        %2579 = vmatprep.subr.mxu0 0.0
        %2580 = vmatpush1.msra.mxu0 0.0
        %2581 = vmatprep.subr.mxu0 0.0
        %2582 = vmatpush1.msra.mxu0 0.0
        %2583 = vmatprep.subr.mxu0 0.0
        %2584 = vmatpush1.msra.mxu0 0.0
        %2585 = vmatprep.subr.mxu0 0.0
        %2586 = vmatpush1.msra.mxu0 0.0
        %2587 = vmatprep.subr.mxu0 0.0
        %2588 = vmatpush1.msra.mxu0 0.0
        %2589 = vmatprep.subr.mxu0 0.0
        %2590 = vmatpush1.msra.mxu0 0.0
        %2591 = vmatprep.subr.mxu0 0.0
        %2592 = vmatpush1.msra.mxu0 0.0
        %2593 = vmatprep.subr.mxu0 0.0
        %2594 = vmatpush1.msra.mxu0 0.0
        %2595 = vmatprep.subr.mxu0 0.0
        %2596 = vmatpush1.msra.mxu0 0.0
        %2597 = vmatprep.subr.mxu0 0.0
        %2598 = vmatpush1.msra.mxu0 0.0
        %2599 = vmatprep.subr.mxu0 0.0
        %2600 = vmatpush1.msra.mxu0 0.0
        %2601 = vmatprep.subr.mxu0 0.0
        %2602 = vmatpush1.msra.mxu0 0.0
        %2603 = vmatprep.subr.mxu0 0.0
        %2604 = vmatpush1.msra.mxu0 0.0
        %2605 = vmatprep.subr.mxu0 0.0
        %2606 = vmatpush1.msra.mxu0 0.0
        %2607 = vmatprep.subr.mxu0 0.0
        %2608 = vmatpush1.msra.mxu0 0.0
        %2609 = vmatprep.subr.mxu0 0.0
        %2610 = vmatpush1.msra.mxu0 0.0
        %2611 = vmatprep.mubr.f32.mxu0 0.0
        %2612 = vmatmul.mubr.f32.gmra.mrb[0].mxu0 %v2545
        %v2613 = vpop.f32.mrb[0].mxu0
        %v2614 = vadd.f32 %v2542, %v2613
        %v2615 = vpop.f32.mrb[0].mxu0
        %2616 = vdwg.mxu0
        %v2617 = vmul.f32 %v2614, 0.5
        %v2618 = vrcp.pop 1.4142135
        %v2619 = vmul.f32 %v2614, %v2618
        %v2620 = verf.f32.pop %v2619
        %v2621 = vadd.f32 %v2620, 1.0
        %v2622 = vmul.f32 %v2617, %v2621
        %v2623 = vld [vmem:[%s15] sm:$0xff]
        %v2624 = vld [vmem:[%s15 + $0x8] sm:$0xff]
        %v2625 = vld [vmem:[%s15 + $0x10] sm:$0xff]
        %v2626 = vld [vmem:[%s15 + $0x18] sm:$0xff]
        %v2627 = vld [vmem:[%s15 + $0x20] sm:$0xff]
        %v2628 = vld [vmem:[%s15 + $0x28] sm:$0xff]
        %v2629 = vld [vmem:[%s15 + $0x30] sm:$0xff]
        %v2630 = vld [vmem:[%s15 + $0x38] sm:$0xff]
        %v2631 = vld [vmem:[%s15 + $0x40] sm:$0xff]
        %v2632 = vld [vmem:[%s15 + $0x48] sm:$0xff]
        %v2633 = vld [vmem:[%s15 + $0x50] sm:$0xff]
        %v2634 = vld [vmem:[%s15 + $0x58] sm:$0xff]
        %v2635 = vld [vmem:[%s15 + $0x60] sm:$0xff]
        %v2636 = vld [vmem:[%s15 + $0x68] sm:$0xff]
        %v2637 = vld [vmem:[%s15 + $0x70] sm:$0xff]
        %v2638 = vld [vmem:[%s15 + $0x78] sm:$0xff]
        %v2639 = vld [vmem:[%s16] sm:$0x1]
        %v2641 = vlaneseq
        %v2642 = vshrl.u32 %v2641, 7
        %v2643 = vsub.s32 0, %v2642
        %v2644 = vrot.slane %v2639, %v2643
        %2646 = vmatprep.subr.mxu0 0.0
        %2647 = vmatpush1.msra.mxu0 %v2623
        %2648 = vmatprep.subr.mxu0 0.0
        %2649 = vmatpush1.msra.mxu0 %v2624
        %2650 = vmatprep.subr.mxu0 0.0
        %2651 = vmatpush1.msra.mxu0 %v2625
        %2652 = vmatprep.subr.mxu0 0.0
        %2653 = vmatpush1.msra.mxu0 %v2626
        %2654 = vmatprep.subr.mxu0 0.0
        %2655 = vmatpush1.msra.mxu0 %v2627
        %2656 = vmatprep.subr.mxu0 0.0
        %2657 = vmatpush1.msra.mxu0 %v2628
        %2658 = vmatprep.subr.mxu0 0.0
        %2659 = vmatpush1.msra.mxu0 %v2629
        %2660 = vmatprep.subr.mxu0 0.0
        %2661 = vmatpush1.msra.mxu0 %v2630
        %2662 = vmatprep.subr.mxu0 0.0
        %2663 = vmatpush1.msra.mxu0 %v2631
        %2664 = vmatprep.subr.mxu0 0.0
        %2665 = vmatpush1.msra.mxu0 %v2632
        %2666 = vmatprep.subr.mxu0 0.0
        %2667 = vmatpush1.msra.mxu0 %v2633
        %2668 = vmatprep.subr.mxu0 0.0
        %2669 = vmatpush1.msra.mxu0 %v2634
        %2670 = vmatprep.subr.mxu0 0.0
        %2671 = vmatpush1.msra.mxu0 %v2635
        %2672 = vmatprep.subr.mxu0 0.0
        %2673 = vmatpush1.msra.mxu0 %v2636
        %2674 = vmatprep.subr.mxu0 0.0
        %2675 = vmatpush1.msra.mxu0 %v2637
        %2676 = vmatprep.subr.mxu0 0.0
        %2677 = vmatpush1.msra.mxu0 %v2638
        %2678 = vmatprep.subr.mxu0 0.0
        %2679 = vmatpush1.msra.mxu0 0.0
        %2680 = vmatprep.subr.mxu0 0.0
        %2681 = vmatpush1.msra.mxu0 0.0
        %2682 = vmatprep.subr.mxu0 0.0
        %2683 = vmatpush1.msra.mxu0 0.0
        %2684 = vmatprep.subr.mxu0 0.0
        %2685 = vmatpush1.msra.mxu0 0.0
        %2686 = vmatprep.subr.mxu0 0.0
        %2687 = vmatpush1.msra.mxu0 0.0
        %2688 = vmatprep.subr.mxu0 0.0
        %2689 = vmatpush1.msra.mxu0 0.0
        %2690 = vmatprep.subr.mxu0 0.0
        %2691 = vmatpush1.msra.mxu0 0.0
        %2692 = vmatprep.subr.mxu0 0.0
        %2693 = vmatpush1.msra.mxu0 0.0
        %2694 = vmatprep.subr.mxu0 0.0
        %2695 = vmatpush1.msra.mxu0 0.0
        %2696 = vmatprep.subr.mxu0 0.0
        %2697 = vmatpush1.msra.mxu0 0.0
        %2698 = vmatprep.subr.mxu0 0.0
        %2699 = vmatpush1.msra.mxu0 0.0
        %2700 = vmatprep.subr.mxu0 0.0
        %2701 = vmatpush1.msra.mxu0 0.0
        %2702 = vmatprep.subr.mxu0 0.0
        %2703 = vmatpush1.msra.mxu0 0.0
        %2704 = vmatprep.subr.mxu0 0.0
        %2705 = vmatpush1.msra.mxu0 0.0
        %2706 = vmatprep.subr.mxu0 0.0
        %2707 = vmatpush1.msra.mxu0 0.0
        %2708 = vmatprep.subr.mxu0 0.0
        %2709 = vmatpush1.msra.mxu0 0.0
        %2710 = vmatprep.mubr.f32.mxu0 0.0
        %2711 = vmatmul.mubr.f32.gmra.mrb[0].mxu0 %v2622
        %v2712 = vpop.f32.mrb[0].mxu0
        %v2713 = vadd.f32 %v2644, %v2712
        %v2714 = vpop.f32.mrb[0].mxu0
        %2715 = vdwg.mxu0
        %v2716 = vadd.f32 %v2503, %v2713
        %2717 = vst.msk [vmem:[%s539] sm:$0xff] %vm547, %v2716
        %s2718 = sand.u32 %s401, 1
        %s2719 = scalar_lea.sflag [#allocation3], %s2718
        %s2720 = sand.u32 %s401, 1
        %s2721 = smul.addr %s2720, 8
        %s2722 = scalar_lea.vmem [#allocation2], %s2721
        // Predicated region
        $region89: #{tpu_custom_call.1} parent=87 // pred_check
          %p2723 = pneg %p411
        $region90: #{tpu_custom_call.1} parent=87 // pred_check_branch
          %2725 = sbr.rel (%p2723) target = $region92
        $region91: #{tpu_custom_call.1} parent=87 // pred_region
          %s2727 = ssub.s32 128, 128
          %2728 = vsyncadd %s2719, %s2727
          %s2729 = smul.addr %s31, 128
          %s2730 = scalar_lea.hbm %s17, %s2729
          %s2732 = sshll.u32 %s2722, 4
          %s2733 = int_to_ptr.vmem [resolvable:$true] %s2732
          %2735 = dma.vmem_to_hbm [thread:$0]  %s2733, 128, %s2730, %s2719
        $region92: #{tpu_custom_call.1} parent=87 // pred_fallthru
          _
      $region88: #{tpu_custom_call.1} parent=5 // pred_fallthru
        _
      %p2736 = scmp.le.s32.totalorder 2, %s26
      // Predicated region
      $region93: #{tpu_custom_call.1} parent=5 // pred_check
        %p2737 = pneg %p2736
      $region94: #{tpu_custom_call.1} parent=5 // pred_check_branch
        %2739 = sbr.rel (%p2737) target = $region96
      $region95: #{tpu_custom_call.1} parent=5 // pred_region
        %s2740 = ssub.s32 %s26, 2
        // Predicated region
        $region97: #{tpu_custom_call.1} parent=95 // pred_check
          %p2741 = pneg %p417
        $region98: #{tpu_custom_call.1} parent=95 // pred_check_branch
          %2743 = sbr.rel (%p2741) target = $region100
        $region99: #{tpu_custom_call.1} parent=95 // pred_region
          %s2744 = sand.u32 %s402, 1
          %s2745 = scalar_lea.sflag [#allocation3], %s2744
          %s2746 = sand.u32 %s402, 1
          %s2747 = smul.addr %s2746, 8
          %s2748 = scalar_lea.vmem [#allocation2], %s2747
          %2749 = dma.done %s2745, 128
        $region100: #{tpu_custom_call.1} parent=95 // pred_fallthru
          _
      $region96: #{tpu_custom_call.1} parent=5 // pred_fallthru
        _
    $region6: #{tpu_custom_call.1} parent=1 // loop_footer
      %s30 = sadd.s32 1, %s26
    $region7: #{tpu_custom_call.1} parent=1 // loop_footer_branch
      %25 = sbr.rel target = $region3
    $region8: #{tpu_custom_call.1} parent=1 // loop_exit
      _
    %2750 = vsyncpa [#allocation3], 1
    %s2751 = scalar_lea.sflag [#allocation3], 1
    %2752 = vsyncpa %s2751, 1

</llo_original>
